<compile_context>
chip_gen: v6e
topology: v6e:2x2x1
jax: 0.10.0
libtpu: 0.0.40
codegen_flags: <defaults>
</compile_context>

<pallas_src>
import math
from functools import partial

import jax
import jax.numpy as jnp
from jax.experimental import pallas as pl
from jax.experimental.pallas import tpu as pltpu


# ---------------------------------------------------------------------------
# In-kernel helpers
# ---------------------------------------------------------------------------
def _layer_norm(x, g, b, eps=1e-5):
    # PyTorch nn.LayerNorm: biased variance, eps inside the sqrt.
    mu = jnp.mean(x, axis=-1, keepdims=True)
    var = jnp.mean((x - mu) ** 2, axis=-1, keepdims=True)
    return (x - mu) * jax.lax.rsqrt(var + eps) * g + b


# ---------------------------------------------------------------------------
# Kernel: one (batch, layer) grid step = one EncoderLayer on one sequence.
# The output block (indexed only by batch) stays VMEM-resident across the
# layer axis and carries x between layers.
# ---------------------------------------------------------------------------
def encoder_layer_kernel(x_ref, kbias_ref,
                         wqkv_ref, wo_ref,
                         w1_ref, b1_ref, w2_ref, b2_ref,
                         ln1g_ref, ln1b_ref, ln2g_ref, ln2b_ref,
                         lnfg_ref, lnfb_ref,
                         o_ref, *, num_heads, head_dim):
    l = pl.program_id(1)
    nl = pl.num_programs(1)
    D = num_heads * head_dim
    scale = 1.0 / math.sqrt(head_dim)

    # Layer 0: seed the VMEM-resident carry with the embedded input.
    @pl.when(l == 0)
    def _():
        o_ref[...] = x_ref[...]

    x = o_ref[0]                         # (L, D) f32 carry
    xb = x.astype(jnp.bfloat16)

    # ---- Fused QKV projection: one MXU pass with 3x wide output ----------
    qkv = jnp.dot(xb, wqkv_ref[0], preferred_element_type=jnp.float32)  # (L,3D)
    q = qkv[:, 0 * D:1 * D]
    k = qkv[:, 1 * D:2 * D]
    v = qkv[:, 2 * D:3 * D]

    def split_heads(t):
        # (L, H*hd) -> (H, L, hd) stacked on a new (major) leading axis.
        return jnp.stack(
            [t[:, h * head_dim:(h + 1) * head_dim] for h in range(num_heads)],
            axis=0)

    qs = split_heads(q).astype(jnp.bfloat16)          # (H, L, hd)
    ks = split_heads(k).astype(jnp.bfloat16)
    vs = split_heads(v).astype(jnp.bfloat16)

    # ---- Attention for this batch only (mask is a per-key additive bias) --
    kbias = kbias_ref[0]                               # (1, L): 0 / -1e30
    # NOTE: the -1e30 bias is added after the 1/sqrt(hd) scale; assumes
    # |scores| << 1e30 (always true for normal activations).
    s = jnp.einsum('hqd,hkd->hqk', qs, ks,
                   preferred_element_type=jnp.float32) * scale
    s = s + kbias[None, :, :]                          # (H, L, L)
    s = s - jnp.max(s, axis=-1, keepdims=True)         # stable, finite
    p = jnp.exp(s)
    p = p * pl.reciprocal(jnp.sum(p, axis=-1, keepdims=True), approx=True)

    ctx = jnp.einsum('hqk,hkd->hqd', p.astype(jnp.bfloat16), vs,
                     preferred_element_type=jnp.float32)          # (H, L, hd)

    # ---- Output projection: one batched matmul over heads + leading sum ---
    attn = jnp.sum(
        jnp.einsum('hqd,hde->hqe', ctx.astype(jnp.bfloat16), wo_ref[0],
                   preferred_element_type=jnp.float32),
        axis=0)                                                    # (L, D)

    # ---- Residual + LayerNorm 1 (dropout = identity, eval mode) -----------
    h1 = _layer_norm(x + attn, ln1g_ref[0], ln1b_ref[0])

    # ---- FeedForward: Linear -> ReLU -> Linear -----------------------------
    f = jnp.dot(h1.astype(jnp.bfloat16), w1_ref[0],
                preferred_element_type=jnp.float32) + b1_ref[0]
    f = jnp.maximum(f, 0.0)
    f = jnp.dot(f.astype(jnp.bfloat16), w2_ref[0],
                preferred_element_type=jnp.float32) + b2_ref[0]

    x_out = _layer_norm(h1 + f, ln2g_ref[0], ln2b_ref[0])

    # Carry to next layer; last layer applies the final encoder LayerNorm.
    o_ref[0] = x_out

    @pl.when(l == nl - 1)
    def _():
        o_ref[0] = _layer_norm(x_out, lnfg_ref[...], lnfb_ref[...])


# ---------------------------------------------------------------------------
# Wrapper: grid = (batch "parallel", layer "arbitrary"); weights streamed
# per layer via BlockSpec index_maps (double-buffered by Pallas).
# ---------------------------------------------------------------------------
def run_encoder_stack(x, kbias, params, num_heads):
    B, L, D = x.shape
    NL = params["wqkv"].shape[0]
    H = num_heads
    hd = D // H
    d_ff = params["w1"].shape[-1]

    kernel = partial(encoder_layer_kernel, num_heads=H, head_dim=hd)

    in_specs = [
        pl.BlockSpec((1, L, D), lambda b, l: (b, 0, 0)),          # x
        pl.BlockSpec((1, 1, L), lambda b, l: (b, 0, 0)),          # key bias
        pl.BlockSpec((1, D, 3 * D), lambda b, l: (l, 0, 0)),      # wqkv
        pl.BlockSpec((1, H, hd, D), lambda b, l: (l, 0, 0, 0)),   # wo (per head rows)
        pl.BlockSpec((1, D, d_ff), lambda b, l: (l, 0, 0)),       # w1
        pl.BlockSpec((1, 1, d_ff), lambda b, l: (l, 0, 0)),       # b1
        pl.BlockSpec((1, d_ff, D), lambda b, l: (l, 0, 0)),       # w2
        pl.BlockSpec((1, 1, D), lambda b, l: (l, 0, 0)),          # b2
        pl.BlockSpec((1, 1, D), lambda b, l: (l, 0, 0)),          # ln1_g
        pl.BlockSpec((1, 1, D), lambda b, l: (l, 0, 0)),          # ln1_b
        pl.BlockSpec((1, 1, D), lambda b, l: (l, 0, 0)),          # ln2_g
        pl.BlockSpec((1, 1, D), lambda b, l: (l, 0, 0)),          # ln2_b
        pl.BlockSpec((1, D), lambda b, l: (0, 0)),                # final_g
        pl.BlockSpec((1, D), lambda b, l: (0, 0)),                # final_b
    ]
    out_spec = pl.BlockSpec((1, L, D), lambda b, l: (b, 0, 0))

    # Advisory cost estimate (matmul flops + exp count + HBM traffic).
    flops = 2 * B * NL * (L * D * 3 * D          # QKV
                          + 2 * H * L * L * hd   # scores + PV
                          + L * D * D            # output projection
                          + 2 * L * D * d_ff)    # FFN
    param_bytes = sum(int(v.size) * int(v.dtype.itemsize)
                      for name, v in params.items() if name != "emb")
    bytes_accessed = int(2 * x.size * 4 + kbias.size * 4 + B * param_bytes)

    return pl.pallas_call(
        kernel,
        out_shape=jax.ShapeDtypeStruct((B, L, D), jnp.float32),
        grid_spec=pltpu.PrefetchScalarGridSpec(
            num_scalar_prefetch=0,
            grid=(B, NL),
            in_specs=in_specs,
            out_specs=out_spec,
        ),
        compiler_params=pltpu.CompilerParams(
            dimension_semantics=("parallel", "arbitrary"),
            vmem_limit_bytes=32 * 1024 * 1024,
        ),
        cost_estimate=pl.CostEstimate(
            flops=flops,
            transcendentals=B * NL * H * L * L,
            bytes_accessed=bytes_accessed),
    )(x, kbias,
      params["wqkv"], params["wo_h"],
      params["w1"], params["b1"], params["w2"], params["b2"],
      params["ln1_g"], params["ln1_b"], params["ln2_g"], params["ln2_b"],
      params["final_g"], params["final_b"])


# ---------------------------------------------------------------------------
# Glue: embedding, positional encoding, mask bias, parameters
# ---------------------------------------------------------------------------
def positional_encoding(L, D):
    position = jnp.arange(L, dtype=jnp.float32)[:, None]
    div = jnp.exp(jnp.arange(0, D, 2, dtype=jnp.float32) * (-math.log(10000.0) / D))
    pe = jnp.zeros((L, D), jnp.float32)
    pe = pe.at[:, 0::2].set(jnp.sin(position * div))
    pe = pe.at[:, 1::2].set(jnp.cos(position * div))
    return pe  # (L, D)


def build_key_bias(src_mask_bool, B, L):
    # src_mask_bool: (B, 1, 1, L), True = visible key.
    # Returns (B, 1, L) additive bias: 0 visible, -1e30 masked (finite -> no
    # NaN even if a row were fully masked).  O(B*L) instead of O((B*L)^2).
    kv = src_mask_bool.reshape(B, 1, L)
    return jnp.where(kv, 0.0, -1e30).astype(jnp.float32)


def init_params(key, vocab_size, d_model, num_layers, num_heads, d_ff):
    head_dim = d_model // num_heads
    ks = jax.random.split(key, 7)
    scale = 0.02

    emb = scale * jax.random.normal(ks[0], (vocab_size, d_model), jnp.float32)
    emb = emb.at[0].set(0.0)  # padding_idx = 0

    def w(k, shape):
        # Matmul weights stored in bf16 (f32 accumulation inside the kernel).
        return (scale * jax.random.normal(k, shape, jnp.float32)).astype(jnp.bfloat16)

    wq = w(ks[1], (num_layers, d_model, d_model))
    wk = w(ks[2], (num_layers, d_model, d_model))
    wv = w(ks[3], (num_layers, d_model, d_model))
    wo = w(ks[4], (num_layers, d_model, d_model))

    return dict(
        emb=emb,
        # Fused QKV weight: (NL, D, 3D)
        wqkv=jnp.concatenate([wq, wk, wv], axis=-1),
        # Output projection with contraction rows pre-split by head: (NL, H, hd, D)
        wo_h=wo.reshape(num_layers, num_heads, head_dim, d_model),
        w1=w(ks[5], (num_layers, d_model, d_ff)),
        b1=jnp.zeros((num_layers, 1, d_ff), jnp.float32),
        w2=w(ks[6], (num_layers, d_ff, d_model)),
        b2=jnp.zeros((num_layers, 1, d_model), jnp.float32),
        ln1_g=jnp.ones((num_layers, 1, d_model), jnp.float32),
        ln1_b=jnp.zeros((num_layers, 1, d_model), jnp.float32),
        ln2_g=jnp.ones((num_layers, 1, d_model), jnp.float32),
        ln2_b=jnp.zeros((num_layers, 1, d_model), jnp.float32),
        final_g=jnp.ones((1, d_model), jnp.float32),
        final_b=jnp.zeros((1, d_model), jnp.float32),
    )


def encoder_forward(src, src_mask, params, num_heads):
    # src: (B, L) int32 token ids ; src_mask: (B, 1, 1, L) bool (1 = visible)
    B, L = src.shape
    D = params["emb"].shape[1]
    x = jnp.take(params["emb"], src, axis=0)          # embedding lookup
    x = x + positional_encoding(L, D)[None, :, :]     # positional encoding
    kbias = build_key_bias(src_mask, B, L)            # (B, 1, L)
    return run_encoder_stack(x, kbias, params, num_heads)


# ---------------------------------------------------------------------------
if __name__ == "__main__":
    vocab_size, d_model, num_layers, num_heads, d_ff = 50, 32, 2, 4, 64
    B, L = 2, 8

    key = jax.random.PRNGKey(0)
    k_param, k_src = jax.random.split(key)
    params = init_params(k_param, vocab_size, d_model, num_layers, num_heads, d_ff)

    src = jax.random.randint(k_src, (B, L), 1, vocab_size, dtype=jnp.int32)
    src = src.at[1, 6:].set(0)                        # some padding tokens
    src_mask = (src != 0).reshape(B, 1, 1, L)         # (B,1,1,L) bool

    out = encoder_forward(src, src_mask, params, num_heads)
    out = jax.block_until_ready(out)

    assert out.shape == (B, L, d_model)
    assert bool(jnp.all(jnp.isfinite(out)))
    print("KERNEL_OK")
</pallas_src>

<mosaic_0001>
module attributes {stable_mosaic.version = 11 : i64} {
  func.func @encoder_layer_kernel(%arg0: i32, %arg1: i32, %arg2: memref<1x8x32xf32, #tpu.memory_space<vmem>>, %arg3: memref<1x1x8xf32, #tpu.memory_space<vmem>>, %arg4: memref<1x32x96xbf16, #tpu.memory_space<vmem>>, %arg5: memref<1x4x8x32xbf16, #tpu.memory_space<vmem>>, %arg6: memref<1x32x64xbf16, #tpu.memory_space<vmem>>, %arg7: memref<1x1x64xf32, #tpu.memory_space<vmem>>, %arg8: memref<1x64x32xbf16, #tpu.memory_space<vmem>>, %arg9: memref<1x1x32xf32, #tpu.memory_space<vmem>>, %arg10: memref<1x1x32xf32, #tpu.memory_space<vmem>>, %arg11: memref<1x1x32xf32, #tpu.memory_space<vmem>>, %arg12: memref<1x1x32xf32, #tpu.memory_space<vmem>>, %arg13: memref<1x1x32xf32, #tpu.memory_space<vmem>>, %arg14: memref<1x32xf32, #tpu.memory_space<vmem>>, %arg15: memref<1x32xf32, #tpu.memory_space<vmem>>, %arg16: memref<1x8x32xf32, #tpu.memory_space<vmem>>) attributes {dimension_semantics = [#tpu.dimension_semantics<parallel>, #tpu.dimension_semantics<arbitrary>], iteration_bounds = array<i64: 2, 2>, scalar_prefetch = 0 : i64, scratch_operands = 0 : i64, tpu.core_type = #tpu.core_type<tc>, window_params = [{transform_indices = @transform_0, window_bounds = array<i64: 1, 8, 32>}, {transform_indices = @transform_1, window_bounds = array<i64: 1, 1, 8>}, {transform_indices = @transform_2, window_bounds = array<i64: 1, 32, 96>}, {transform_indices = @transform_3, window_bounds = array<i64: 1, 4, 8, 32>}, {transform_indices = @transform_4, window_bounds = array<i64: 1, 32, 64>}, {transform_indices = @transform_5, window_bounds = array<i64: 1, 1, 64>}, {transform_indices = @transform_6, window_bounds = array<i64: 1, 64, 32>}, {transform_indices = @transform_7, window_bounds = array<i64: 1, 1, 32>}, {transform_indices = @transform_8, window_bounds = array<i64: 1, 1, 32>}, {transform_indices = @transform_9, window_bounds = array<i64: 1, 1, 32>}, {transform_indices = @transform_10, window_bounds = array<i64: 1, 1, 32>}, {transform_indices = @transform_11, window_bounds = array<i64: 1, 1, 32>}, {pipeline_mode = #tpu.pipeline_mode<synchronous>, transform_indices = @transform_12, window_bounds = array<i64: 1, 32>}, {pipeline_mode = #tpu.pipeline_mode<synchronous>, transform_indices = @transform_13, window_bounds = array<i64: 1, 32>}, {transform_indices = @transform_14, window_bounds = array<i64: 1, 8, 32>}]} {
    %c0_i32 = arith.constant 0 : i32
    %0 = arith.cmpi eq, %arg1, %c0_i32 : i32
    %1 = arith.extui %0 : i1 to i32
    %c0_i32_0 = arith.constant 0 : i32
    %2 = arith.cmpi ne, %1, %c0_i32_0 : i32
    scf.if %2 {
      %c0_61 = arith.constant 0 : index
      %c0_62 = arith.constant 0 : index
      %c0_63 = arith.constant 0 : index
      %145 = vector.load %arg2[%c0_61, %c0_62, %c0_63] : memref<1x8x32xf32, #tpu.memory_space<vmem>>, vector<1x8x32xf32>
      %c0_64 = arith.constant 0 : index
      %c0_65 = arith.constant 0 : index
      %c0_66 = arith.constant 0 : index
      %146 = vector.load %arg16[%c0_64, %c0_65, %c0_66] : memref<1x8x32xf32, #tpu.memory_space<vmem>>, vector<1x8x32xf32>
      tpu.vector_store %arg16[%c0_64, %c0_65, %c0_66], %145 {strides = array<i32>} : memref<1x8x32xf32, #tpu.memory_space<vmem>>, vector<1x8x32xf32>,
    } else {
    }
    %c0 = arith.constant 0 : index
    %c0_1 = arith.constant 0 : index
    %c0_2 = arith.constant 0 : index
    %3 = vector.load %arg16[%c0, %c0_1, %c0_2] : memref<1x8x32xf32, #tpu.memory_space<vmem>>, vector<1x8x32xf32>
    %4 = vector.shape_cast %3 : vector<1x8x32xf32> to vector<8x32xf32>
    %5 = arith.truncf %4 : vector<8x32xf32> to vector<8x32xbf16>
    %c0_3 = arith.constant 0 : index
    %c0_4 = arith.constant 0 : index
    %c0_5 = arith.constant 0 : index
    %6 = vector.load %arg4[%c0_3, %c0_4, %c0_5] : memref<1x32x96xbf16, #tpu.memory_space<vmem>>, vector<1x32x96xbf16>
    %7 = vector.shape_cast %6 : vector<1x32x96xbf16> to vector<32x96xbf16>
    %cst = arith.constant dense<0.000000e+00> : vector<8x96xf32>
    %8 = tpu.matmul %5, %7, %cst {dimension_numbers = #tpu.dot_dimension_numbers<[1], [0], [0], [1], [0, 0, 1, 1], [], []>} : vector<8x32xbf16>, vector<32x96xbf16>, vector<8x96xf32> -> vector<8x96xf32>
    %9 = vector.extract_strided_slice %8 {offsets = [0, 0], sizes = [8, 32], strides = [1, 1]} : vector<8x96xf32> to vector<8x32xf32>
    %10 = vector.extract_strided_slice %8 {offsets = [0, 32], sizes = [8, 32], strides = [1, 1]} : vector<8x96xf32> to vector<8x32xf32>
    %11 = vector.extract_strided_slice %8 {offsets = [0, 64], sizes = [8, 32], strides = [1, 1]} : vector<8x96xf32> to vector<8x32xf32>
    %12 = vector.extract_strided_slice %9 {offsets = [0, 0], sizes = [8, 8], strides = [1, 1]} : vector<8x32xf32> to vector<8x8xf32>
    %13 = vector.extract_strided_slice %9 {offsets = [0, 8], sizes = [8, 8], strides = [1, 1]} : vector<8x32xf32> to vector<8x8xf32>
    %14 = vector.extract_strided_slice %9 {offsets = [0, 16], sizes = [8, 8], strides = [1, 1]} : vector<8x32xf32> to vector<8x8xf32>
    %15 = vector.extract_strided_slice %9 {offsets = [0, 24], sizes = [8, 8], strides = [1, 1]} : vector<8x32xf32> to vector<8x8xf32>
    %16 = vector.shape_cast %12 : vector<8x8xf32> to vector<1x8x8xf32>
    %17 = vector.shape_cast %13 : vector<8x8xf32> to vector<1x8x8xf32>
    %18 = vector.shape_cast %14 : vector<8x8xf32> to vector<1x8x8xf32>
    %19 = vector.shape_cast %15 : vector<8x8xf32> to vector<1x8x8xf32>
    %20 = tpu.concatenate %16, %17, %18, %19 in 0 : vector<1x8x8xf32>, vector<1x8x8xf32>, vector<1x8x8xf32>, vector<1x8x8xf32> -> vector<4x8x8xf32>
    %21 = arith.truncf %20 : vector<4x8x8xf32> to vector<4x8x8xbf16>
    %22 = vector.extract_strided_slice %10 {offsets = [0, 0], sizes = [8, 8], strides = [1, 1]} : vector<8x32xf32> to vector<8x8xf32>
    %23 = vector.extract_strided_slice %10 {offsets = [0, 8], sizes = [8, 8], strides = [1, 1]} : vector<8x32xf32> to vector<8x8xf32>
    %24 = vector.extract_strided_slice %10 {offsets = [0, 16], sizes = [8, 8], strides = [1, 1]} : vector<8x32xf32> to vector<8x8xf32>
    %25 = vector.extract_strided_slice %10 {offsets = [0, 24], sizes = [8, 8], strides = [1, 1]} : vector<8x32xf32> to vector<8x8xf32>
    %26 = vector.shape_cast %22 : vector<8x8xf32> to vector<1x8x8xf32>
    %27 = vector.shape_cast %23 : vector<8x8xf32> to vector<1x8x8xf32>
    %28 = vector.shape_cast %24 : vector<8x8xf32> to vector<1x8x8xf32>
    %29 = vector.shape_cast %25 : vector<8x8xf32> to vector<1x8x8xf32>
    %30 = tpu.concatenate %26, %27, %28, %29 in 0 : vector<1x8x8xf32>, vector<1x8x8xf32>, vector<1x8x8xf32>, vector<1x8x8xf32> -> vector<4x8x8xf32>
    %31 = arith.truncf %30 : vector<4x8x8xf32> to vector<4x8x8xbf16>
    %32 = vector.extract_strided_slice %11 {offsets = [0, 0], sizes = [8, 8], strides = [1, 1]} : vector<8x32xf32> to vector<8x8xf32>
    %33 = vector.extract_strided_slice %11 {offsets = [0, 8], sizes = [8, 8], strides = [1, 1]} : vector<8x32xf32> to vector<8x8xf32>
    %34 = vector.extract_strided_slice %11 {offsets = [0, 16], sizes = [8, 8], strides = [1, 1]} : vector<8x32xf32> to vector<8x8xf32>
    %35 = vector.extract_strided_slice %11 {offsets = [0, 24], sizes = [8, 8], strides = [1, 1]} : vector<8x32xf32> to vector<8x8xf32>
    %36 = vector.shape_cast %32 : vector<8x8xf32> to vector<1x8x8xf32>
    %37 = vector.shape_cast %33 : vector<8x8xf32> to vector<1x8x8xf32>
    %38 = vector.shape_cast %34 : vector<8x8xf32> to vector<1x8x8xf32>
    %39 = vector.shape_cast %35 : vector<8x8xf32> to vector<1x8x8xf32>
    %40 = tpu.concatenate %36, %37, %38, %39 in 0 : vector<1x8x8xf32>, vector<1x8x8xf32>, vector<1x8x8xf32>, vector<1x8x8xf32> -> vector<4x8x8xf32>
    %41 = arith.truncf %40 : vector<4x8x8xf32> to vector<4x8x8xbf16>
    %c0_6 = arith.constant 0 : index
    %c0_7 = arith.constant 0 : index
    %c0_8 = arith.constant 0 : index
    %42 = vector.load %arg3[%c0_6, %c0_7, %c0_8] : memref<1x1x8xf32, #tpu.memory_space<vmem>>, vector<1x1x8xf32>
    %43 = vector.shape_cast %42 : vector<1x1x8xf32> to vector<1x8xf32>
    "tpu.trace_start"() <{level = 10 : i32, message = "hqd,hkd->hqk"}> : () -> ()
    %cst_9 = arith.constant dense<0.000000e+00> : vector<4x8x8xf32>
    %44 = tpu.matmul %21, %31, %cst_9 {dimension_numbers = #tpu.dot_dimension_numbers<[2], [2], [1], [1], [0, 0, 0, 1, 1, 1], [0], [0]>} : vector<4x8x8xbf16>, vector<4x8x8xbf16>, vector<4x8x8xf32> -> vector<4x8x8xf32>
    "tpu.trace_stop"() : () -> ()
    %cst_10 = arith.constant 0.353553385 : f32
    %45 = vector.broadcast %cst_10 : f32 to vector<4x8x8xf32>
    %46 = arith.mulf %44, %45 : vector<4x8x8xf32>
    %47 = vector.shape_cast %43 : vector<1x8xf32> to vector<1x1x8xf32>
    %48 = vector.broadcast %47 : vector<1x1x8xf32> to vector<4x8x8xf32>
    %49 = arith.addf %46, %48 : vector<4x8x8xf32>
    %cst_11 = arith.constant dense<0xFF800000> : vector<4x8xf32>
    %50 = vector.multi_reduction <maximumf>, %49, %cst_11 [2] : vector<4x8x8xf32> to vector<4x8xf32>
    %51 = vector.shape_cast %50 : vector<4x8xf32> to vector<4x8x1xf32>
    %52 = vector.broadcast %51 : vector<4x8x1xf32> to vector<4x8x8xf32>
    %53 = arith.subf %49, %52 : vector<4x8x8xf32>
    %54 = math.exp %53 : vector<4x8x8xf32>
    %cst_12 = arith.constant dense<0.000000e+00> : vector<4x8xf32>
    %55 = vector.multi_reduction <add>, %54, %cst_12 [2] : vector<4x8x8xf32> to vector<4x8xf32>
    %56 = vector.shape_cast %55 : vector<4x8xf32> to vector<4x8x1xf32>
    %57 = tpu.reciprocal %56 {approx = true} : vector<4x8x1xf32> -> vector<4x8x1xf32>
    %58 = vector.broadcast %57 : vector<4x8x1xf32> to vector<4x8x8xf32>
    %59 = arith.mulf %54, %58 : vector<4x8x8xf32>
    %60 = arith.truncf %59 : vector<4x8x8xf32> to vector<4x8x8xbf16>
    "tpu.trace_start"() <{level = 10 : i32, message = "hqk,hkd->hqd"}> : () -> ()
    %cst_13 = arith.constant dense<0.000000e+00> : vector<4x8x8xf32>
    %61 = tpu.matmul %60, %41, %cst_13 {dimension_numbers = #tpu.dot_dimension_numbers<[2], [1], [1], [2], [0, 0, 0, 1, 1, 2], [0], [0]>} : vector<4x8x8xbf16>, vector<4x8x8xbf16>, vector<4x8x8xf32> -> vector<4x8x8xf32>
    "tpu.trace_stop"() : () -> ()
    %62 = arith.truncf %61 : vector<4x8x8xf32> to vector<4x8x8xbf16>
    %c0_14 = arith.constant 0 : index
    %c0_15 = arith.constant 0 : index
    %c0_16 = arith.constant 0 : index
    %c0_17 = arith.constant 0 : index
    %63 = vector.load %arg5[%c0_14, %c0_15, %c0_16, %c0_17] : memref<1x4x8x32xbf16, #tpu.memory_space<vmem>>, vector<1x4x8x32xbf16>
    %64 = vector.shape_cast %63 : vector<1x4x8x32xbf16> to vector<4x8x32xbf16>
    "tpu.trace_start"() <{level = 10 : i32, message = "hqd,hde->hqe"}> : () -> ()
    %cst_18 = arith.constant dense<0.000000e+00> : vector<4x8x32xf32>
    %65 = tpu.matmul %62, %64, %cst_18 {dimension_numbers = #tpu.dot_dimension_numbers<[2], [1], [1], [2], [0, 0, 0, 1, 1, 2], [0], [0]>} : vector<4x8x8xbf16>, vector<4x8x32xbf16>, vector<4x8x32xf32> -> vector<4x8x32xf32>
    "tpu.trace_stop"() : () -> ()
    %cst_19 = arith.constant dense<0.000000e+00> : vector<8x32xf32>
    %66 = vector.multi_reduction <add>, %65, %cst_19 [0] : vector<4x8x32xf32> to vector<8x32xf32>
    %67 = arith.addf %4, %66 : vector<8x32xf32>
    %c0_20 = arith.constant 0 : index
    %c0_21 = arith.constant 0 : index
    %c0_22 = arith.constant 0 : index
    %68 = vector.load %arg10[%c0_20, %c0_21, %c0_22] : memref<1x1x32xf32, #tpu.memory_space<vmem>>, vector<1x1x32xf32>
    %69 = vector.shape_cast %68 : vector<1x1x32xf32> to vector<1x32xf32>
    %c0_23 = arith.constant 0 : index
    %c0_24 = arith.constant 0 : index
    %c0_25 = arith.constant 0 : index
    %70 = vector.load %arg11[%c0_23, %c0_24, %c0_25] : memref<1x1x32xf32, #tpu.memory_space<vmem>>, vector<1x1x32xf32>
    %71 = vector.shape_cast %70 : vector<1x1x32xf32> to vector<1x32xf32>
    %cst_26 = arith.constant dense<0.000000e+00> : vector<8xf32>
    %72 = vector.multi_reduction <add>, %67, %cst_26 [1] : vector<8x32xf32> to vector<8xf32>
    %73 = vector.shape_cast %72 : vector<8xf32> to vector<8x1xf32>
    %cst_27 = arith.constant 3.200000e+01 : f32
    %74 = vector.broadcast %cst_27 : f32 to vector<8x1xf32>
    %75 = arith.divf %73, %74 : vector<8x1xf32>
    %76 = vector.broadcast %75 : vector<8x1xf32> to vector<8x32xf32>
    %77 = arith.subf %67, %76 : vector<8x32xf32>
    %78 = arith.mulf %77, %77 : vector<8x32xf32>
    %cst_28 = arith.constant dense<0.000000e+00> : vector<8xf32>
    %79 = vector.multi_reduction <add>, %78, %cst_28 [1] : vector<8x32xf32> to vector<8xf32>
    %80 = vector.shape_cast %79 : vector<8xf32> to vector<8x1xf32>
    %cst_29 = arith.constant 3.200000e+01 : f32
    %81 = vector.broadcast %cst_29 : f32 to vector<8x1xf32>
    %82 = arith.divf %80, %81 : vector<8x1xf32>
    %83 = vector.broadcast %75 : vector<8x1xf32> to vector<8x32xf32>
    %84 = arith.subf %67, %83 : vector<8x32xf32>
    %cst_30 = arith.constant 9.99999974E-6 : f32
    %85 = vector.broadcast %cst_30 : f32 to vector<8x1xf32>
    %86 = arith.addf %82, %85 : vector<8x1xf32>
    %87 = math.rsqrt %86 : vector<8x1xf32>
    %88 = vector.broadcast %87 : vector<8x1xf32> to vector<8x32xf32>
    %89 = arith.mulf %84, %88 : vector<8x32xf32>
    %90 = vector.broadcast %69 : vector<1x32xf32> to vector<8x32xf32>
    %91 = arith.mulf %89, %90 : vector<8x32xf32>
    %92 = vector.broadcast %71 : vector<1x32xf32> to vector<8x32xf32>
    %93 = arith.addf %91, %92 : vector<8x32xf32>
    %94 = arith.truncf %93 : vector<8x32xf32> to vector<8x32xbf16>
    %c0_31 = arith.constant 0 : index
    %c0_32 = arith.constant 0 : index
    %c0_33 = arith.constant 0 : index
    %95 = vector.load %arg6[%c0_31, %c0_32, %c0_33] : memref<1x32x64xbf16, #tpu.memory_space<vmem>>, vector<1x32x64xbf16>
    %96 = vector.shape_cast %95 : vector<1x32x64xbf16> to vector<32x64xbf16>
    %cst_34 = arith.constant dense<0.000000e+00> : vector<8x64xf32>
    %97 = tpu.matmul %94, %96, %cst_34 {dimension_numbers = #tpu.dot_dimension_numbers<[1], [0], [0], [1], [0, 0, 1, 1], [], []>} : vector<8x32xbf16>, vector<32x64xbf16>, vector<8x64xf32> -> vector<8x64xf32>
    %c0_35 = arith.constant 0 : index
    %c0_36 = arith.constant 0 : index
    %c0_37 = arith.constant 0 : index
    %98 = vector.load %arg7[%c0_35, %c0_36, %c0_37] : memref<1x1x64xf32, #tpu.memory_space<vmem>>, vector<1x1x64xf32>
    %99 = vector.shape_cast %98 : vector<1x1x64xf32> to vector<1x64xf32>
    %100 = vector.broadcast %99 : vector<1x64xf32> to vector<8x64xf32>
    %101 = arith.addf %97, %100 : vector<8x64xf32>
    %cst_38 = arith.constant 0.000000e+00 : f32
    %102 = vector.broadcast %cst_38 : f32 to vector<8x64xf32>
    %103 = arith.maximumf %101, %102 : vector<8x64xf32>
    %104 = arith.truncf %103 : vector<8x64xf32> to vector<8x64xbf16>
    %c0_39 = arith.constant 0 : index
    %c0_40 = arith.constant 0 : index
    %c0_41 = arith.constant 0 : index
    %105 = vector.load %arg8[%c0_39, %c0_40, %c0_41] : memref<1x64x32xbf16, #tpu.memory_space<vmem>>, vector<1x64x32xbf16>
    %106 = vector.shape_cast %105 : vector<1x64x32xbf16> to vector<64x32xbf16>
    %cst_42 = arith.constant dense<0.000000e+00> : vector<8x32xf32>
    %107 = tpu.matmul %104, %106, %cst_42 {dimension_numbers = #tpu.dot_dimension_numbers<[1], [0], [0], [1], [0, 0, 1, 1], [], []>} : vector<8x64xbf16>, vector<64x32xbf16>, vector<8x32xf32> -> vector<8x32xf32>
    %c0_43 = arith.constant 0 : index
    %c0_44 = arith.constant 0 : index
    %c0_45 = arith.constant 0 : index
    %108 = vector.load %arg9[%c0_43, %c0_44, %c0_45] : memref<1x1x32xf32, #tpu.memory_space<vmem>>, vector<1x1x32xf32>
    %109 = vector.shape_cast %108 : vector<1x1x32xf32> to vector<1x32xf32>
    %110 = vector.broadcast %109 : vector<1x32xf32> to vector<8x32xf32>
    %111 = arith.addf %107, %110 : vector<8x32xf32>
    %112 = arith.addf %93, %111 : vector<8x32xf32>
    %c0_46 = arith.constant 0 : index
    %c0_47 = arith.constant 0 : index
    %c0_48 = arith.constant 0 : index
    %113 = vector.load %arg12[%c0_46, %c0_47, %c0_48] : memref<1x1x32xf32, #tpu.memory_space<vmem>>, vector<1x1x32xf32>
    %114 = vector.shape_cast %113 : vector<1x1x32xf32> to vector<1x32xf32>
    %c0_49 = arith.constant 0 : index
    %c0_50 = arith.constant 0 : index
    %c0_51 = arith.constant 0 : index
    %115 = vector.load %arg13[%c0_49, %c0_50, %c0_51] : memref<1x1x32xf32, #tpu.memory_space<vmem>>, vector<1x1x32xf32>
    %116 = vector.shape_cast %115 : vector<1x1x32xf32> to vector<1x32xf32>
    %cst_52 = arith.constant dense<0.000000e+00> : vector<8xf32>
    %117 = vector.multi_reduction <add>, %112, %cst_52 [1] : vector<8x32xf32> to vector<8xf32>
    %118 = vector.shape_cast %117 : vector<8xf32> to vector<8x1xf32>
    %cst_53 = arith.constant 3.200000e+01 : f32
    %119 = vector.broadcast %cst_53 : f32 to vector<8x1xf32>
    %120 = arith.divf %118, %119 : vector<8x1xf32>
    %121 = vector.broadcast %120 : vector<8x1xf32> to vector<8x32xf32>
    %122 = arith.subf %112, %121 : vector<8x32xf32>
    %123 = arith.mulf %122, %122 : vector<8x32xf32>
    %cst_54 = arith.constant dense<0.000000e+00> : vector<8xf32>
    %124 = vector.multi_reduction <add>, %123, %cst_54 [1] : vector<8x32xf32> to vector<8xf32>
    %125 = vector.shape_cast %124 : vector<8xf32> to vector<8x1xf32>
    %cst_55 = arith.constant 3.200000e+01 : f32
    %126 = vector.broadcast %cst_55 : f32 to vector<8x1xf32>
    %127 = arith.divf %125, %126 : vector<8x1xf32>
    %128 = vector.broadcast %120 : vector<8x1xf32> to vector<8x32xf32>
    %129 = arith.subf %112, %128 : vector<8x32xf32>
    %cst_56 = arith.constant 9.99999974E-6 : f32
    %130 = vector.broadcast %cst_56 : f32 to vector<8x1xf32>
    %131 = arith.addf %127, %130 : vector<8x1xf32>
    %132 = math.rsqrt %131 : vector<8x1xf32>
    %133 = vector.broadcast %132 : vector<8x1xf32> to vector<8x32xf32>
    %134 = arith.mulf %129, %133 : vector<8x32xf32>
    %135 = vector.broadcast %114 : vector<1x32xf32> to vector<8x32xf32>
    %136 = arith.mulf %134, %135 : vector<8x32xf32>
    %137 = vector.broadcast %116 : vector<1x32xf32> to vector<8x32xf32>
    %138 = arith.addf %136, %137 : vector<8x32xf32>
    %c0_57 = arith.constant 0 : index
    %c0_58 = arith.constant 0 : index
    %c0_59 = arith.constant 0 : index
    %139 = vector.load %arg16[%c0_57, %c0_58, %c0_59] : memref<1x8x32xf32, #tpu.memory_space<vmem>>, vector<1x8x32xf32>
    %140 = vector.shape_cast %139 : vector<1x8x32xf32> to vector<8x32xf32>
    %141 = vector.shape_cast %138 : vector<8x32xf32> to vector<1x8x32xf32>
    tpu.vector_store %arg16[%c0_57, %c0_58, %c0_59], %141 {strides = array<i32>} : memref<1x8x32xf32, #tpu.memory_space<vmem>>, vector<1x8x32xf32>,
    %c1_i32 = arith.constant 1 : i32
    %142 = arith.cmpi eq, %arg1, %c1_i32 : i32
    %143 = arith.extui %142 : i1 to i32
    %c0_i32_60 = arith.constant 0 : i32
    %144 = arith.cmpi ne, %143, %c0_i32_60 : i32
    scf.if %144 {
      %c0_61 = arith.constant 0 : index
      %c0_62 = arith.constant 0 : index
      %145 = vector.load %arg14[%c0_61, %c0_62] : memref<1x32xf32, #tpu.memory_space<vmem>>, vector<1x32xf32>
      %c0_63 = arith.constant 0 : index
      %c0_64 = arith.constant 0 : index
      %146 = vector.load %arg15[%c0_63, %c0_64] : memref<1x32xf32, #tpu.memory_space<vmem>>, vector<1x32xf32>
      %cst_65 = arith.constant dense<0.000000e+00> : vector<8xf32>
      %147 = vector.multi_reduction <add>, %138, %cst_65 [1] : vector<8x32xf32> to vector<8xf32>
      %148 = vector.shape_cast %147 : vector<8xf32> to vector<8x1xf32>
      %cst_66 = arith.constant 3.200000e+01 : f32
      %149 = vector.broadcast %cst_66 : f32 to vector<8x1xf32>
      %150 = arith.divf %148, %149 : vector<8x1xf32>
      %151 = vector.broadcast %150 : vector<8x1xf32> to vector<8x32xf32>
      %152 = arith.subf %138, %151 : vector<8x32xf32>
      %153 = arith.mulf %152, %152 : vector<8x32xf32>
      %cst_67 = arith.constant dense<0.000000e+00> : vector<8xf32>
      %154 = vector.multi_reduction <add>, %153, %cst_67 [1] : vector<8x32xf32> to vector<8xf32>
      %155 = vector.shape_cast %154 : vector<8xf32> to vector<8x1xf32>
      %cst_68 = arith.constant 3.200000e+01 : f32
      %156 = vector.broadcast %cst_68 : f32 to vector<8x1xf32>
      %157 = arith.divf %155, %156 : vector<8x1xf32>
      %158 = vector.broadcast %150 : vector<8x1xf32> to vector<8x32xf32>
      %159 = arith.subf %138, %158 : vector<8x32xf32>
      %cst_69 = arith.constant 9.99999974E-6 : f32
      %160 = vector.broadcast %cst_69 : f32 to vector<8x1xf32>
      %161 = arith.addf %157, %160 : vector<8x1xf32>
      %162 = math.rsqrt %161 : vector<8x1xf32>
      %163 = vector.broadcast %162 : vector<8x1xf32> to vector<8x32xf32>
      %164 = arith.mulf %159, %163 : vector<8x32xf32>
      %165 = vector.broadcast %145 : vector<1x32xf32> to vector<8x32xf32>
      %166 = arith.mulf %164, %165 : vector<8x32xf32>
      %167 = vector.broadcast %146 : vector<1x32xf32> to vector<8x32xf32>
      %168 = arith.addf %166, %167 : vector<8x32xf32>
      %c0_70 = arith.constant 0 : index
      %c0_71 = arith.constant 0 : index
      %c0_72 = arith.constant 0 : index
      %169 = vector.load %arg16[%c0_70, %c0_71, %c0_72] : memref<1x8x32xf32, #tpu.memory_space<vmem>>, vector<1x8x32xf32>
      %170 = vector.shape_cast %169 : vector<1x8x32xf32> to vector<8x32xf32>
      %171 = vector.shape_cast %168 : vector<8x32xf32> to vector<1x8x32xf32>
      tpu.vector_store %arg16[%c0_70, %c0_71, %c0_72], %171 {strides = array<i32>} : memref<1x8x32xf32, #tpu.memory_space<vmem>>, vector<1x8x32xf32>,
    } else {
    }
    return
  }
  func.func @transform_0(%arg0: i32, %arg1: i32) -> (i32, i32, i32) {
    %c0_i32 = arith.constant 0 : i32
    %c0_i32_0 = arith.constant 0 : i32
    %c0_i32_1 = arith.constant 0 : i32
    return %arg0, %c0_i32, %c0_i32_0 : i32, i32, i32
  }
  func.func @transform_1(%arg0: i32, %arg1: i32) -> (i32, i32, i32) {
    %c0_i32 = arith.constant 0 : i32
    %c0_i32_0 = arith.constant 0 : i32
    %c0_i32_1 = arith.constant 0 : i32
    return %arg0, %c0_i32, %c0_i32_0 : i32, i32, i32
  }
  func.func @transform_2(%arg0: i32, %arg1: i32) -> (i32, i32, i32) {
    %c0_i32 = arith.constant 0 : i32
    %c0_i32_0 = arith.constant 0 : i32
    %c0_i32_1 = arith.constant 0 : i32
    return %arg1, %c0_i32, %c0_i32_0 : i32, i32, i32
  }
  func.func @transform_3(%arg0: i32, %arg1: i32) -> (i32, i32, i32, i32) {
    %c0_i32 = arith.constant 0 : i32
    %c0_i32_0 = arith.constant 0 : i32
    %c0_i32_1 = arith.constant 0 : i32
    %c0_i32_2 = arith.constant 0 : i32
    return %arg1, %c0_i32, %c0_i32_0, %c0_i32_1 : i32, i32, i32, i32
  }
  func.func @transform_4(%arg0: i32, %arg1: i32) -> (i32, i32, i32) {
    %c0_i32 = arith.constant 0 : i32
    %c0_i32_0 = arith.constant 0 : i32
    %c0_i32_1 = arith.constant 0 : i32
    return %arg1, %c0_i32, %c0_i32_0 : i32, i32, i32
  }
  func.func @transform_5(%arg0: i32, %arg1: i32) -> (i32, i32, i32) {
    %c0_i32 = arith.constant 0 : i32
    %c0_i32_0 = arith.constant 0 : i32
    %c0_i32_1 = arith.constant 0 : i32
    return %arg1, %c0_i32, %c0_i32_0 : i32, i32, i32
  }
  func.func @transform_6(%arg0: i32, %arg1: i32) -> (i32, i32, i32) {
    %c0_i32 = arith.constant 0 : i32
    %c0_i32_0 = arith.constant 0 : i32
    %c0_i32_1 = arith.constant 0 : i32
    return %arg1, %c0_i32, %c0_i32_0 : i32, i32, i32
  }
  func.func @transform_7(%arg0: i32, %arg1: i32) -> (i32, i32, i32) {
    %c0_i32 = arith.constant 0 : i32
    %c0_i32_0 = arith.constant 0 : i32
    %c0_i32_1 = arith.constant 0 : i32
    return %arg1, %c0_i32, %c0_i32_0 : i32, i32, i32
  }
  func.func @transform_8(%arg0: i32, %arg1: i32) -> (i32, i32, i32) {
    %c0_i32 = arith.constant 0 : i32
    %c0_i32_0 = arith.constant 0 : i32
    %c0_i32_1 = arith.constant 0 : i32
    return %arg1, %c0_i32, %c0_i32_0 : i32, i32, i32
  }
  func.func @transform_9(%arg0: i32, %arg1: i32) -> (i32, i32, i32) {
    %c0_i32 = arith.constant 0 : i32
    %c0_i32_0 = arith.constant 0 : i32
    %c0_i32_1 = arith.constant 0 : i32
    return %arg1, %c0_i32, %c0_i32_0 : i32, i32, i32
  }
  func.func @transform_10(%arg0: i32, %arg1: i32) -> (i32, i32, i32) {
    %c0_i32 = arith.constant 0 : i32
    %c0_i32_0 = arith.constant 0 : i32
    %c0_i32_1 = arith.constant 0 : i32
    return %arg1, %c0_i32, %c0_i32_0 : i32, i32, i32
  }
  func.func @transform_11(%arg0: i32, %arg1: i32) -> (i32, i32, i32) {
    %c0_i32 = arith.constant 0 : i32
    %c0_i32_0 = arith.constant 0 : i32
    %c0_i32_1 = arith.constant 0 : i32
    return %arg1, %c0_i32, %c0_i32_0 : i32, i32, i32
  }
  func.func @transform_12(%arg0: i32, %arg1: i32) -> (i32, i32) {
    %c0_i32 = arith.constant 0 : i32
    %c0_i32_0 = arith.constant 0 : i32
    %c0_i32_1 = arith.constant 0 : i32
    return %c0_i32, %c0_i32_0 : i32, i32
  }
  func.func @transform_13(%arg0: i32, %arg1: i32) -> (i32, i32) {
    %c0_i32 = arith.constant 0 : i32
    %c0_i32_0 = arith.constant 0 : i32
    %c0_i32_1 = arith.constant 0 : i32
    return %c0_i32, %c0_i32_0 : i32, i32
  }
  func.func @transform_14(%arg0: i32, %arg1: i32) -> (i32, i32, i32) {
    %c0_i32 = arith.constant 0 : i32
    %c0_i32_0 = arith.constant 0 : i32
    %c0_i32_1 = arith.constant 0 : i32
    return %arg0, %c0_i32, %c0_i32_0 : i32, i32, i32
  }
}

</mosaic_0001>

<llo_original>
// kernel: tpu_custom_call.1
$region0: #{tpu_custom_call.1}
  #allocation0 [shape = 'u32[]', space=smem, size = 0x4, offset = 0x4, fixed_abs, tag = 'smem constant byte address 0x4 - core index']
  #allocation1 [shape = 'u32[144,128]{1,0:T(1,128)}', space=vmem, size = 0x12000, scoped, tag = 'internal scratch']
  %s0 = inlined_call_operand.hbm [shape: f32[2,8,32], index: 0, kind: input, shape index: {}]
  %s1 = inlined_call_operand.hbm [shape: f32[2,1,8], index: 1, kind: input, shape index: {}]
  %s2 = inlined_call_operand.vmem [shape: bf16[2,32,96], index: 2, kind: input, shape index: {}]
  %s3 = inlined_call_operand.vmem [shape: bf16[2,4,8,32], index: 3, kind: input, shape index: {}]
  %s4 = inlined_call_operand.vmem [shape: bf16[2,32,64], index: 4, kind: input, shape index: {}]
  %s5 = inlined_call_operand.vmem [shape: f32[2,1,64], index: 5, kind: input, shape index: {}]
  %s6 = inlined_call_operand.vmem [shape: bf16[2,64,32], index: 6, kind: input, shape index: {}]
  %s7 = inlined_call_operand.vmem [shape: f32[2,1,32], index: 7, kind: input, shape index: {}]
  %s8 = inlined_call_operand.vmem [shape: f32[2,1,32], index: 8, kind: input, shape index: {}]
  %s9 = inlined_call_operand.vmem [shape: f32[2,1,32], index: 9, kind: input, shape index: {}]
  %s10 = inlined_call_operand.vmem [shape: f32[2,1,32], index: 10, kind: input, shape index: {}]
  %s11 = inlined_call_operand.vmem [shape: f32[2,1,32], index: 11, kind: input, shape index: {}]
  %s12 = inlined_call_operand.vmem [shape: f32[1,32], index: 12, kind: input, shape index: {}]
  %s13 = inlined_call_operand.vmem [shape: f32[1,32], index: 13, kind: input, shape index: {}]
  %s14 = inlined_call_operand.hbm [shape: f32[2,8,32], index: 14, kind: output, shape index: {}]
  %s15 = sld [smem:[#allocation0]]
  $region105: #{tpu_custom_call.1} parent=0
    _
  %s17 = ssub.s32 1, %s15
  %s18 = scalar_select 0, %s17, %s15
  $region1: #{tpu_custom_call.1} parent=0
    #allocation2 [shape = 'u8[8192]{0}', space=vmem, size = 0x2000, scoped, tag = 'input window, operand 0']
    #allocation3 [shape = 's32[2]{0}', space=sflag, size = 0x8, scoped, tag = 'scoped memory for tpu_custom_call.1']
    #allocation4 [shape = 's32[2]{0}', space=sflag, size = 0x8, scoped, tag = 'scoped memory for tpu_custom_call.1']
    #allocation5 [shape = 'u8[1024]{0}', space=vmem, size = 0x400, scoped, tag = 'input window, operand 1']
    #allocation6 [shape = 's32[2]{0}', space=sflag, size = 0x8, scoped, tag = 'scoped memory for tpu_custom_call.1']
    #allocation7 [shape = 'u8[8192]{0}', space=vmem, size = 0x2000, scoped, tag = 'output window, operand 0']
    %19 = vsyncpa [#allocation3], 0
    %s20 = scalar_lea.sflag [#allocation3], 1
    %21 = vsyncpa %s20, 0
    %22 = vsyncpa [#allocation6], 0
    %s23 = scalar_lea.sflag [#allocation6], 1
    %24 = vsyncpa %s23, 0
    %25 = vsyncpa [#allocation4], 0
    %s26 = scalar_lea.sflag [#allocation4], 1
    %27 = vsyncpa %s26, 0
    loop: start=0, step=1, limit=6
    $region2: #{tpu_custom_call.1} parent=1 // loop_pre_header
      _
    $region3: #{tpu_custom_call.1} parent=1 // loop_header
      %s29 = sphi 0, %s33
      %p30 = scmp.ge.s32.totalorder %s29, 6
      %s36 = sphi 0, %s48
      %s37 = sphi 0, %s44
      %s38 = sphi 0, %s36
      %s39 = sphi 0, %s37
      %s40 = sphi 0, %s38
      %s41 = sphi 0, %s39
      %s51 = sphi 0, %s53
      %s54 = sphi 0, %s51
      %s55 = sphi 0, %s54
      %s71 = sphi 0, %s55
      %s77 = sphi 0, %s79
      %s80 = sphi 0, %s77
      %s81 = sphi 0, %s80
      %s97 = sphi 0, %s81
      %s103 = sphi 0, %s105
      %s106 = sphi 0, %s103
      %s107 = sphi 0, %s106
      %s123 = sphi 0, %s107
      %s129 = sphi 0, %s131
      %s132 = sphi 0, %s129
      %s133 = sphi 0, %s132
      %s149 = sphi 0, %s133
      %s155 = sphi 0, %s157
      %s158 = sphi 0, %s155
      %s159 = sphi 0, %s158
      %s175 = sphi 0, %s159
      %s181 = sphi 0, %s183
      %s184 = sphi 0, %s181
      %s185 = sphi 0, %s184
      %s201 = sphi 0, %s185
      %s207 = sphi 0, %s209
      %s210 = sphi 0, %s207
      %s211 = sphi 0, %s210
      %s227 = sphi 0, %s211
      %s233 = sphi 0, %s235
      %s236 = sphi 0, %s233
      %s237 = sphi 0, %s236
      %s253 = sphi 0, %s237
      %s259 = sphi 0, %s261
      %s262 = sphi 0, %s259
      %s263 = sphi 0, %s262
      %s279 = sphi 0, %s263
      %s285 = sphi 0, %s287
      %s288 = sphi 0, %s285
      %s289 = sphi 0, %s288
      %s305 = sphi 0, %s289
      %s311 = sphi 0, %s313
      %s314 = sphi 0, %s311
      %s315 = sphi 0, %s314
      %s331 = sphi 0, %s315
      %s337 = sphi 0, %s339
      %s340 = sphi 0, %s337
      %s341 = sphi 0, %s340
      %s357 = sphi 0, %s341
      %s361 = sphi 0, %s361
      %s363 = sphi 0, %s361
      %s364 = sphi 0, %s363
      %s378 = sphi 0, %s364
      %s382 = sphi 0, %s382
      %s384 = sphi 0, %s382
      %s385 = sphi 0, %s384
      %s399 = sphi 0, %s385
      %s405 = sphi 0, %s407
      %s408 = sphi 0, %s405
      %s409 = sphi 0, %s408
      %s425 = sphi 0, %s409
    $region4: #{tpu_custom_call.1} parent=1 // loop_header_branch
      %32 = sbr.rel (%p30) target = $region8
    $region5: #{tpu_custom_call.1} parent=1 // loop_body
      %s34 = ssub.s32 %s29, 1
      %s35 = ssub.s32 %s29, 2
      %s42 = sadd.s32 1, %s37
      %p43 = scmp.ge.s32.totalorder %s42, 2
      %s44 = scalar_select %p43, 0, %s42
      %s45 = sadd.s32 1, %s36
      %s46 = scalar_select %p43, %s45, %s36
      %p47 = scmp.ge.s32.totalorder %s46, 2
      %s48 = scalar_select %p47, 0, %s46
      %s49 = ssub.s32 %s36, %s48
      %p50 = scmp.eq.s32.totalorder %s49, 0
      %s52 = sadd.s32 %s51, 1
      %s53 = scalar_select %p50, %s51, %s52
      %p56 = pneg %p50
      %p57 = scmp.eq.s32.totalorder %s29, 3
      %p58 = por %p56, %p57
      %p59 = scmp.ne.s32.totalorder %s51, %s54
      %p60 = scmp.eq.s32.totalorder %s29, 0
      %p61 = por %p59, %p60
      %p62 = scmp.ne.s32.totalorder %s51, %s54
      %p63 = scmp.eq.s32.totalorder %s34, 3
      %p64 = por %p62, %p63
      %p65 = scmp.ne.s32.totalorder %s54, %s55
      %p66 = scmp.eq.s32.totalorder %s34, 0
      %p67 = por %p65, %p66
      %p68 = scmp.ne.s32.totalorder %s54, %s55
      %p69 = scmp.eq.s32.totalorder %s35, 3
      %p70 = por %p68, %p69
      %p72 = scmp.ne.s32.totalorder %s55, %s71
      %p73 = scmp.eq.s32.totalorder %s35, 0
      %p74 = por %p72, %p73
      %s75 = ssub.s32 %s36, %s48
      %p76 = scmp.eq.s32.totalorder %s75, 0
      %s78 = sadd.s32 %s77, 1
      %s79 = scalar_select %p76, %s77, %s78
      %p82 = pneg %p76
      %p83 = scmp.eq.s32.totalorder %s29, 3
      %p84 = por %p82, %p83
      %p85 = scmp.ne.s32.totalorder %s77, %s80
      %p86 = scmp.eq.s32.totalorder %s29, 0
      %p87 = por %p85, %p86
      %p88 = scmp.ne.s32.totalorder %s77, %s80
      %p89 = scmp.eq.s32.totalorder %s34, 3
      %p90 = por %p88, %p89
      %p91 = scmp.ne.s32.totalorder %s80, %s81
      %p92 = scmp.eq.s32.totalorder %s34, 0
      %p93 = por %p91, %p92
      %p94 = scmp.ne.s32.totalorder %s80, %s81
      %p95 = scmp.eq.s32.totalorder %s35, 3
      %p96 = por %p94, %p95
      %p98 = scmp.ne.s32.totalorder %s81, %s97
      %p99 = scmp.eq.s32.totalorder %s35, 0
      %p100 = por %p98, %p99
      %s101 = ssub.s32 %s37, %s44
      %p102 = scmp.eq.s32.totalorder %s101, 0
      %s104 = sadd.s32 %s103, 1
      %s105 = scalar_select %p102, %s103, %s104
      %p108 = pneg %p102
      %p109 = scmp.eq.s32.totalorder %s29, 3
      %p110 = por %p108, %p109
      %p111 = scmp.ne.s32.totalorder %s103, %s106
      %p112 = scmp.eq.s32.totalorder %s29, 0
      %p113 = por %p111, %p112
      %p114 = scmp.ne.s32.totalorder %s103, %s106
      %p115 = scmp.eq.s32.totalorder %s34, 3
      %p116 = por %p114, %p115
      %p117 = scmp.ne.s32.totalorder %s106, %s107
      %p118 = scmp.eq.s32.totalorder %s34, 0
      %p119 = por %p117, %p118
      %p120 = scmp.ne.s32.totalorder %s106, %s107
      %p121 = scmp.eq.s32.totalorder %s35, 3
      %p122 = por %p120, %p121
      %p124 = scmp.ne.s32.totalorder %s107, %s123
      %p125 = scmp.eq.s32.totalorder %s35, 0
      %p126 = por %p124, %p125
      %s127 = ssub.s32 %s37, %s44
      %p128 = scmp.eq.s32.totalorder %s127, 0
      %s130 = sadd.s32 %s129, 1
      %s131 = scalar_select %p128, %s129, %s130
      %p134 = pneg %p128
      %p135 = scmp.eq.s32.totalorder %s29, 3
      %p136 = por %p134, %p135
      %p137 = scmp.ne.s32.totalorder %s129, %s132
      %p138 = scmp.eq.s32.totalorder %s29, 0
      %p139 = por %p137, %p138
      %p140 = scmp.ne.s32.totalorder %s129, %s132
      %p141 = scmp.eq.s32.totalorder %s34, 3
      %p142 = por %p140, %p141
      %p143 = scmp.ne.s32.totalorder %s132, %s133
      %p144 = scmp.eq.s32.totalorder %s34, 0
      %p145 = por %p143, %p144
      %p146 = scmp.ne.s32.totalorder %s132, %s133
      %p147 = scmp.eq.s32.totalorder %s35, 3
      %p148 = por %p146, %p147
      %p150 = scmp.ne.s32.totalorder %s133, %s149
      %p151 = scmp.eq.s32.totalorder %s35, 0
      %p152 = por %p150, %p151
      %s153 = ssub.s32 %s37, %s44
      %p154 = scmp.eq.s32.totalorder %s153, 0
      %s156 = sadd.s32 %s155, 1
      %s157 = scalar_select %p154, %s155, %s156
      %p160 = pneg %p154
      %p161 = scmp.eq.s32.totalorder %s29, 3
      %p162 = por %p160, %p161
      %p163 = scmp.ne.s32.totalorder %s155, %s158
      %p164 = scmp.eq.s32.totalorder %s29, 0
      %p165 = por %p163, %p164
      %p166 = scmp.ne.s32.totalorder %s155, %s158
      %p167 = scmp.eq.s32.totalorder %s34, 3
      %p168 = por %p166, %p167
      %p169 = scmp.ne.s32.totalorder %s158, %s159
      %p170 = scmp.eq.s32.totalorder %s34, 0
      %p171 = por %p169, %p170
      %p172 = scmp.ne.s32.totalorder %s158, %s159
      %p173 = scmp.eq.s32.totalorder %s35, 3
      %p174 = por %p172, %p173
      %p176 = scmp.ne.s32.totalorder %s159, %s175
      %p177 = scmp.eq.s32.totalorder %s35, 0
      %p178 = por %p176, %p177
      %s179 = ssub.s32 %s37, %s44
      %p180 = scmp.eq.s32.totalorder %s179, 0
      %s182 = sadd.s32 %s181, 1
      %s183 = scalar_select %p180, %s181, %s182
      %p186 = pneg %p180
      %p187 = scmp.eq.s32.totalorder %s29, 3
      %p188 = por %p186, %p187
      %p189 = scmp.ne.s32.totalorder %s181, %s184
      %p190 = scmp.eq.s32.totalorder %s29, 0
      %p191 = por %p189, %p190
      %p192 = scmp.ne.s32.totalorder %s181, %s184
      %p193 = scmp.eq.s32.totalorder %s34, 3
      %p194 = por %p192, %p193
      %p195 = scmp.ne.s32.totalorder %s184, %s185
      %p196 = scmp.eq.s32.totalorder %s34, 0
      %p197 = por %p195, %p196
      %p198 = scmp.ne.s32.totalorder %s184, %s185
      %p199 = scmp.eq.s32.totalorder %s35, 3
      %p200 = por %p198, %p199
      %p202 = scmp.ne.s32.totalorder %s185, %s201
      %p203 = scmp.eq.s32.totalorder %s35, 0
      %p204 = por %p202, %p203
      %s205 = ssub.s32 %s37, %s44
      %p206 = scmp.eq.s32.totalorder %s205, 0
      %s208 = sadd.s32 %s207, 1
      %s209 = scalar_select %p206, %s207, %s208
      %p212 = pneg %p206
      %p213 = scmp.eq.s32.totalorder %s29, 3
      %p214 = por %p212, %p213
      %p215 = scmp.ne.s32.totalorder %s207, %s210
      %p216 = scmp.eq.s32.totalorder %s29, 0
      %p217 = por %p215, %p216
      %p218 = scmp.ne.s32.totalorder %s207, %s210
      %p219 = scmp.eq.s32.totalorder %s34, 3
      %p220 = por %p218, %p219
      %p221 = scmp.ne.s32.totalorder %s210, %s211
      %p222 = scmp.eq.s32.totalorder %s34, 0
      %p223 = por %p221, %p222
      %p224 = scmp.ne.s32.totalorder %s210, %s211
      %p225 = scmp.eq.s32.totalorder %s35, 3
      %p226 = por %p224, %p225
      %p228 = scmp.ne.s32.totalorder %s211, %s227
      %p229 = scmp.eq.s32.totalorder %s35, 0
      %p230 = por %p228, %p229
      %s231 = ssub.s32 %s37, %s44
      %p232 = scmp.eq.s32.totalorder %s231, 0
      %s234 = sadd.s32 %s233, 1
      %s235 = scalar_select %p232, %s233, %s234
      %p238 = pneg %p232
      %p239 = scmp.eq.s32.totalorder %s29, 3
      %p240 = por %p238, %p239
      %p241 = scmp.ne.s32.totalorder %s233, %s236
      %p242 = scmp.eq.s32.totalorder %s29, 0
      %p243 = por %p241, %p242
      %p244 = scmp.ne.s32.totalorder %s233, %s236
      %p245 = scmp.eq.s32.totalorder %s34, 3
      %p246 = por %p244, %p245
      %p247 = scmp.ne.s32.totalorder %s236, %s237
      %p248 = scmp.eq.s32.totalorder %s34, 0
      %p249 = por %p247, %p248
      %p250 = scmp.ne.s32.totalorder %s236, %s237
      %p251 = scmp.eq.s32.totalorder %s35, 3
      %p252 = por %p250, %p251
      %p254 = scmp.ne.s32.totalorder %s237, %s253
      %p255 = scmp.eq.s32.totalorder %s35, 0
      %p256 = por %p254, %p255
      %s257 = ssub.s32 %s37, %s44
      %p258 = scmp.eq.s32.totalorder %s257, 0
      %s260 = sadd.s32 %s259, 1
      %s261 = scalar_select %p258, %s259, %s260
      %p264 = pneg %p258
      %p265 = scmp.eq.s32.totalorder %s29, 3
      %p266 = por %p264, %p265
      %p267 = scmp.ne.s32.totalorder %s259, %s262
      %p268 = scmp.eq.s32.totalorder %s29, 0
      %p269 = por %p267, %p268
      %p270 = scmp.ne.s32.totalorder %s259, %s262
      %p271 = scmp.eq.s32.totalorder %s34, 3
      %p272 = por %p270, %p271
      %p273 = scmp.ne.s32.totalorder %s262, %s263
      %p274 = scmp.eq.s32.totalorder %s34, 0
      %p275 = por %p273, %p274
      %p276 = scmp.ne.s32.totalorder %s262, %s263
      %p277 = scmp.eq.s32.totalorder %s35, 3
      %p278 = por %p276, %p277
      %p280 = scmp.ne.s32.totalorder %s263, %s279
      %p281 = scmp.eq.s32.totalorder %s35, 0
      %p282 = por %p280, %p281
      %s283 = ssub.s32 %s37, %s44
      %p284 = scmp.eq.s32.totalorder %s283, 0
      %s286 = sadd.s32 %s285, 1
      %s287 = scalar_select %p284, %s285, %s286
      %p290 = pneg %p284
      %p291 = scmp.eq.s32.totalorder %s29, 3
      %p292 = por %p290, %p291
      %p293 = scmp.ne.s32.totalorder %s285, %s288
      %p294 = scmp.eq.s32.totalorder %s29, 0
      %p295 = por %p293, %p294
      %p296 = scmp.ne.s32.totalorder %s285, %s288
      %p297 = scmp.eq.s32.totalorder %s34, 3
      %p298 = por %p296, %p297
      %p299 = scmp.ne.s32.totalorder %s288, %s289
      %p300 = scmp.eq.s32.totalorder %s34, 0
      %p301 = por %p299, %p300
      %p302 = scmp.ne.s32.totalorder %s288, %s289
      %p303 = scmp.eq.s32.totalorder %s35, 3
      %p304 = por %p302, %p303
      %p306 = scmp.ne.s32.totalorder %s289, %s305
      %p307 = scmp.eq.s32.totalorder %s35, 0
      %p308 = por %p306, %p307
      %s309 = ssub.s32 %s37, %s44
      %p310 = scmp.eq.s32.totalorder %s309, 0
      %s312 = sadd.s32 %s311, 1
      %s313 = scalar_select %p310, %s311, %s312
      %p316 = pneg %p310
      %p317 = scmp.eq.s32.totalorder %s29, 3
      %p318 = por %p316, %p317
      %p319 = scmp.ne.s32.totalorder %s311, %s314
      %p320 = scmp.eq.s32.totalorder %s29, 0
      %p321 = por %p319, %p320
      %p322 = scmp.ne.s32.totalorder %s311, %s314
      %p323 = scmp.eq.s32.totalorder %s34, 3
      %p324 = por %p322, %p323
      %p325 = scmp.ne.s32.totalorder %s314, %s315
      %p326 = scmp.eq.s32.totalorder %s34, 0
      %p327 = por %p325, %p326
      %p328 = scmp.ne.s32.totalorder %s314, %s315
      %p329 = scmp.eq.s32.totalorder %s35, 3
      %p330 = por %p328, %p329
      %p332 = scmp.ne.s32.totalorder %s315, %s331
      %p333 = scmp.eq.s32.totalorder %s35, 0
      %p334 = por %p332, %p333
      %s335 = ssub.s32 %s37, %s44
      %p336 = scmp.eq.s32.totalorder %s335, 0
      %s338 = sadd.s32 %s337, 1
      %s339 = scalar_select %p336, %s337, %s338
      %p342 = pneg %p336
      %p343 = scmp.eq.s32.totalorder %s29, 3
      %p344 = por %p342, %p343
      %p345 = scmp.ne.s32.totalorder %s337, %s340
      %p346 = scmp.eq.s32.totalorder %s29, 0
      %p347 = por %p345, %p346
      %p348 = scmp.ne.s32.totalorder %s337, %s340
      %p349 = scmp.eq.s32.totalorder %s34, 3
      %p350 = por %p348, %p349
      %p351 = scmp.ne.s32.totalorder %s340, %s341
      %p352 = scmp.eq.s32.totalorder %s34, 0
      %p353 = por %p351, %p352
      %p354 = scmp.ne.s32.totalorder %s340, %s341
      %p355 = scmp.eq.s32.totalorder %s35, 3
      %p356 = por %p354, %p355
      %p358 = scmp.ne.s32.totalorder %s341, %s357
      %p359 = scmp.eq.s32.totalorder %s35, 0
      %p360 = por %p358, %p359
      %s362 = sadd.s32 %s361, 1
      %p365 = scmp.eq.s32.totalorder %s29, 3
      %p366 = scmp.ne.s32.totalorder %s361, %s363
      %p367 = scmp.eq.s32.totalorder %s29, 0
      %p368 = por %p366, %p367
      %p369 = scmp.ne.s32.totalorder %s361, %s363
      %p370 = scmp.eq.s32.totalorder %s34, 3
      %p371 = por %p369, %p370
      %p372 = scmp.ne.s32.totalorder %s363, %s364
      %p373 = scmp.eq.s32.totalorder %s34, 0
      %p374 = por %p372, %p373
      %p375 = scmp.ne.s32.totalorder %s363, %s364
      %p376 = scmp.eq.s32.totalorder %s35, 3
      %p377 = por %p375, %p376
      %p379 = scmp.ne.s32.totalorder %s364, %s378
      %p380 = scmp.eq.s32.totalorder %s35, 0
      %p381 = por %p379, %p380
      %s383 = sadd.s32 %s382, 1
      %p386 = scmp.eq.s32.totalorder %s29, 3
      %p387 = scmp.ne.s32.totalorder %s382, %s384
      %p388 = scmp.eq.s32.totalorder %s29, 0
      %p389 = por %p387, %p388
      %p390 = scmp.ne.s32.totalorder %s382, %s384
      %p391 = scmp.eq.s32.totalorder %s34, 3
      %p392 = por %p390, %p391
      %p393 = scmp.ne.s32.totalorder %s384, %s385
      %p394 = scmp.eq.s32.totalorder %s34, 0
      %p395 = por %p393, %p394
      %p396 = scmp.ne.s32.totalorder %s384, %s385
      %p397 = scmp.eq.s32.totalorder %s35, 3
      %p398 = por %p396, %p397
      %p400 = scmp.ne.s32.totalorder %s385, %s399
      %p401 = scmp.eq.s32.totalorder %s35, 0
      %p402 = por %p400, %p401
      %s403 = ssub.s32 %s36, %s48
      %p404 = scmp.eq.s32.totalorder %s403, 0
      %s406 = sadd.s32 %s405, 1
      %s407 = scalar_select %p404, %s405, %s406
      %p410 = pneg %p404
      %p411 = scmp.eq.s32.totalorder %s29, 3
      %p412 = por %p410, %p411
      %p413 = scmp.ne.s32.totalorder %s405, %s408
      %p414 = scmp.eq.s32.totalorder %s29, 0
      %p415 = por %p413, %p414
      %p416 = scmp.ne.s32.totalorder %s405, %s408
      %p417 = scmp.eq.s32.totalorder %s34, 3
      %p418 = por %p416, %p417
      %p419 = scmp.ne.s32.totalorder %s408, %s409
      %p420 = scmp.eq.s32.totalorder %s34, 0
      %p421 = por %p419, %p420
      %p422 = scmp.ne.s32.totalorder %s408, %s409
      %p423 = scmp.eq.s32.totalorder %s35, 3
      %p424 = por %p422, %p423
      %p426 = scmp.ne.s32.totalorder %s409, %s425
      %p427 = scmp.eq.s32.totalorder %s35, 0
      %p428 = por %p426, %p427
      %p429 = scmp.le.s32.totalorder 1, %s29
      %p430 = scmp.lt.s32.totalorder %s29, 5
      %p431 = pnand %p429, %p430
      %p432 = pneg %p431
      // Predicated region
      $region9: #{tpu_custom_call.1} parent=5 // pred_check
        _
      $region10: #{tpu_custom_call.1} parent=5 // pred_check_branch
        %434 = sbr.rel (%p431) target = $region12
      $region11: #{tpu_custom_call.1} parent=5 // pred_region
        %s435 = ssub.s32 %s29, 1
        // Predicated region
        $region13: #{tpu_custom_call.1} parent=11 // pred_check
          %p436 = pneg %p374
        $region14: #{tpu_custom_call.1} parent=11 // pred_check_branch
          %438 = sbr.rel (%p436) target = $region16
        $region15: #{tpu_custom_call.1} parent=11 // pred_region
          _
        $region16: #{tpu_custom_call.1} parent=11 // pred_fallthru
          _
        // Predicated region
        $region17: #{tpu_custom_call.1} parent=11 // pred_check
          %p439 = pneg %p395
        $region18: #{tpu_custom_call.1} parent=11 // pred_check_branch
          %441 = sbr.rel (%p439) target = $region20
        $region19: #{tpu_custom_call.1} parent=11 // pred_region
          _
        $region20: #{tpu_custom_call.1} parent=11 // pred_fallthru
          _
      $region12: #{tpu_custom_call.1} parent=5 // pred_fallthru
        _
      %p442 = scmp.lt.s32.totalorder %s29, 4
      // Predicated region
      $region21: #{tpu_custom_call.1} parent=5 // pred_check
        %p443 = pneg %p442
      $region22: #{tpu_custom_call.1} parent=5 // pred_check_branch
        %445 = sbr.rel (%p443) target = $region24
      $region23: #{tpu_custom_call.1} parent=5 // pred_region
        // Predicated region
        $region25: #{tpu_custom_call.1} parent=23 // pred_check
          %p446 = pneg %p61
        $region26: #{tpu_custom_call.1} parent=23 // pred_check_branch
          %448 = sbr.rel (%p446) target = $region28
        $region27: #{tpu_custom_call.1} parent=23 // pred_region
          %s449 = sand.u32 %s51, 1
          %s450 = scalar_lea.sflag [#allocation3], %s449
          %s451 = sand.u32 %s51, 1
          %s452 = smul.addr %s451, 8
          %s453 = scalar_lea.vmem [#allocation2], %s452
          %s455 = ssub.s32 128, 128
          %456 = vsyncadd %s450, %s455
          %s457 = smul.addr %s36, 128
          %s458 = scalar_lea.hbm %s0, %s457
          %s460 = sshll.u32 %s453, 4
          %s461 = int_to_ptr.vmem [resolvable:$true] %s460
          %463 = dma.hbm_to_vmem [thread:$0]  %s458, 128, %s461, %s450
        $region28: #{tpu_custom_call.1} parent=23 // pred_fallthru
          _
        // Predicated region
        $region29: #{tpu_custom_call.1} parent=23 // pred_check
          %p464 = pneg %p87
        $region30: #{tpu_custom_call.1} parent=23 // pred_check_branch
          %466 = sbr.rel (%p464) target = $region32
        $region31: #{tpu_custom_call.1} parent=23 // pred_region
          %s467 = sand.u32 %s77, 1
          %s468 = scalar_lea.sflag [#allocation6], %s467
          %s469 = sand.u32 %s77, 1
          %s470 = scalar_lea.vmem [#allocation5], %s469
          %s472 = ssub.s32 16, 16
          %473 = vsyncadd %s468, %s472
          %s474 = smul.addr %s36, 16
          %s475 = scalar_lea.hbm %s1, %s474
          %s477 = sshll.u32 %s470, 4
          %s478 = int_to_ptr.vmem [resolvable:$true] %s477
          %480 = dma.hbm_to_vmem [thread:$0]  %s475, 16, %s478, %s468
        $region32: #{tpu_custom_call.1} parent=23 // pred_fallthru
          _
        // Predicated region
        $region33: #{tpu_custom_call.1} parent=23 // pred_check
          %p481 = pneg %p113
        $region34: #{tpu_custom_call.1} parent=23 // pred_check_branch
          %483 = sbr.rel (%p481) target = $region36
        $region35: #{tpu_custom_call.1} parent=23 // pred_region
          %p484 = scmp.lt.s32.totalorder %s37, 1
          %s485 = scalar_select %p484, %s37, 1
          %s486 = smul.addr %s485, 4
          %s487 = smul.addr %s486, 4
          %s488 = scalar_lea.vmem %s2, %s487
        $region36: #{tpu_custom_call.1} parent=23 // pred_fallthru
          _
        // Predicated region
        $region37: #{tpu_custom_call.1} parent=23 // pred_check
          %p489 = pneg %p139
        $region38: #{tpu_custom_call.1} parent=23 // pred_check_branch
          %491 = sbr.rel (%p489) target = $region40
        $region39: #{tpu_custom_call.1} parent=23 // pred_region
          %p492 = scmp.lt.s32.totalorder %s37, 1
          %s493 = scalar_select %p492, %s37, 1
          %s494 = smul.addr %s493, 4
          %s495 = smul.addr %s494, 4
          %s496 = scalar_lea.vmem %s3, %s495
        $region40: #{tpu_custom_call.1} parent=23 // pred_fallthru
          _
        // Predicated region
        $region41: #{tpu_custom_call.1} parent=23 // pred_check
          %p497 = pneg %p165
        $region42: #{tpu_custom_call.1} parent=23 // pred_check_branch
          %499 = sbr.rel (%p497) target = $region44
        $region43: #{tpu_custom_call.1} parent=23 // pred_region
          %p500 = scmp.lt.s32.totalorder %s37, 1
          %s501 = scalar_select %p500, %s37, 1
          %s502 = smul.addr %s501, 4
          %s503 = smul.addr %s502, 4
          %s504 = scalar_lea.vmem %s4, %s503
        $region44: #{tpu_custom_call.1} parent=23 // pred_fallthru
          _
        // Predicated region
        $region45: #{tpu_custom_call.1} parent=23 // pred_check
          %p505 = pneg %p191
        $region46: #{tpu_custom_call.1} parent=23 // pred_check_branch
          %507 = sbr.rel (%p505) target = $region48
        $region47: #{tpu_custom_call.1} parent=23 // pred_region
          %p508 = scmp.lt.s32.totalorder %s37, 1
          %s509 = scalar_select %p508, %s37, 1
          %s510 = scalar_lea.vmem %s5, %s509
        $region48: #{tpu_custom_call.1} parent=23 // pred_fallthru
          _
        // Predicated region
        $region49: #{tpu_custom_call.1} parent=23 // pred_check
          %p511 = pneg %p217
        $region50: #{tpu_custom_call.1} parent=23 // pred_check_branch
          %513 = sbr.rel (%p511) target = $region52
        $region51: #{tpu_custom_call.1} parent=23 // pred_region
          %p514 = scmp.lt.s32.totalorder %s37, 1
          %s515 = scalar_select %p514, %s37, 1
          %s516 = smul.addr %s515, 8
          %s517 = smul.addr %s516, 4
          %s518 = scalar_lea.vmem %s6, %s517
        $region52: #{tpu_custom_call.1} parent=23 // pred_fallthru
          _
        // Predicated region
        $region53: #{tpu_custom_call.1} parent=23 // pred_check
          %p519 = pneg %p243
        $region54: #{tpu_custom_call.1} parent=23 // pred_check_branch
          %521 = sbr.rel (%p519) target = $region56
        $region55: #{tpu_custom_call.1} parent=23 // pred_region
          %p522 = scmp.lt.s32.totalorder %s37, 1
          %s523 = scalar_select %p522, %s37, 1
          %s524 = scalar_lea.vmem %s7, %s523
        $region56: #{tpu_custom_call.1} parent=23 // pred_fallthru
          _
        // Predicated region
        $region57: #{tpu_custom_call.1} parent=23 // pred_check
          %p525 = pneg %p269
        $region58: #{tpu_custom_call.1} parent=23 // pred_check_branch
          %527 = sbr.rel (%p525) target = $region60
        $region59: #{tpu_custom_call.1} parent=23 // pred_region
          %p528 = scmp.lt.s32.totalorder %s37, 1
          %s529 = scalar_select %p528, %s37, 1
          %s530 = scalar_lea.vmem %s8, %s529
        $region60: #{tpu_custom_call.1} parent=23 // pred_fallthru
          _
        // Predicated region
        $region61: #{tpu_custom_call.1} parent=23 // pred_check
          %p531 = pneg %p295
        $region62: #{tpu_custom_call.1} parent=23 // pred_check_branch
          %533 = sbr.rel (%p531) target = $region64
        $region63: #{tpu_custom_call.1} parent=23 // pred_region
          %p534 = scmp.lt.s32.totalorder %s37, 1
          %s535 = scalar_select %p534, %s37, 1
          %s536 = scalar_lea.vmem %s9, %s535
        $region64: #{tpu_custom_call.1} parent=23 // pred_fallthru
          _
        // Predicated region
        $region65: #{tpu_custom_call.1} parent=23 // pred_check
          %p537 = pneg %p321
        $region66: #{tpu_custom_call.1} parent=23 // pred_check_branch
          %539 = sbr.rel (%p537) target = $region68
        $region67: #{tpu_custom_call.1} parent=23 // pred_region
          %p540 = scmp.lt.s32.totalorder %s37, 1
          %s541 = scalar_select %p540, %s37, 1
          %s542 = scalar_lea.vmem %s10, %s541
        $region68: #{tpu_custom_call.1} parent=23 // pred_fallthru
          _
        // Predicated region
        $region69: #{tpu_custom_call.1} parent=23 // pred_check
          %p543 = pneg %p347
        $region70: #{tpu_custom_call.1} parent=23 // pred_check_branch
          %545 = sbr.rel (%p543) target = $region72
        $region71: #{tpu_custom_call.1} parent=23 // pred_region
          %p546 = scmp.lt.s32.totalorder %s37, 1
          %s547 = scalar_select %p546, %s37, 1
          %s548 = scalar_lea.vmem %s11, %s547
        $region72: #{tpu_custom_call.1} parent=23 // pred_fallthru
          _
      $region24: #{tpu_custom_call.1} parent=5 // pred_fallthru
        _
      %p549 = scmp.le.s32.totalorder 1, %s29
      %p550 = scmp.lt.s32.totalorder %s29, 5
      %p551 = pnand %p549, %p550
      %p552 = pneg %p551
      // Predicated region
      $region73: #{tpu_custom_call.1} parent=5 // pred_check
        _
      $region74: #{tpu_custom_call.1} parent=5 // pred_check_branch
        %554 = sbr.rel (%p551) target = $region76
      $region75: #{tpu_custom_call.1} parent=5 // pred_region
        %s555 = ssub.s32 %s29, 1
        %s556 = sand.u32 %s54, 1
        %s557 = scalar_lea.sflag [#allocation3], %s556
        %s558 = sand.u32 %s54, 1
        %s559 = smul.addr %s558, 8
        %s560 = scalar_lea.vmem [#allocation2], %s559
        // Predicated region
        $region77: #{tpu_custom_call.1} parent=75 // pred_check
          %p561 = pneg %p67
        $region78: #{tpu_custom_call.1} parent=75 // pred_check_branch
          %563 = sbr.rel (%p561) target = $region80
        $region79: #{tpu_custom_call.1} parent=75 // pred_region
          %564 = dma.done %s557, 128
        $region80: #{tpu_custom_call.1} parent=75 // pred_fallthru
          _
        %s565 = sand.u32 %s80, 1
        %s566 = scalar_lea.sflag [#allocation6], %s565
        %s567 = sand.u32 %s80, 1
        %s568 = scalar_lea.vmem [#allocation5], %s567
        // Predicated region
        $region81: #{tpu_custom_call.1} parent=75 // pred_check
          %p569 = pneg %p93
        $region82: #{tpu_custom_call.1} parent=75 // pred_check_branch
          %571 = sbr.rel (%p569) target = $region84
        $region83: #{tpu_custom_call.1} parent=75 // pred_region
          %572 = dma.done %s566, 16
        $region84: #{tpu_custom_call.1} parent=75 // pred_fallthru
          _
        %s573 = sand.u32 %s54, 1
        %s574 = scalar_lea.sflag [#allocation3], %s573
        %s575 = sand.u32 %s54, 1
        %s576 = smul.addr %s575, 8
        %s577 = scalar_lea.vmem [#allocation2], %s576
        %p578 = pneg %p67
        %p579 = pneg %p64
        %s580 = sand.u32 %s80, 1
        %s581 = scalar_lea.sflag [#allocation6], %s580
        %s582 = sand.u32 %s80, 1
        %s583 = scalar_lea.vmem [#allocation5], %s582
        %p584 = pneg %p93
        %p585 = pneg %p90
        %p586 = scmp.lt.s32.totalorder %s39, 1
        %s587 = scalar_select %p586, %s39, 1
        %s588 = smul.addr %s587, 4
        %s589 = smul.addr %s588, 4
        %s590 = scalar_lea.vmem %s2, %s589
        %p591 = pneg %p119
        %p592 = pneg %p116
        %p593 = scmp.lt.s32.totalorder %s39, 1
        %s594 = scalar_select %p593, %s39, 1
        %s595 = smul.addr %s594, 4
        %s596 = smul.addr %s595, 4
        %s597 = scalar_lea.vmem %s3, %s596
        %p598 = pneg %p145
        %p599 = pneg %p142
        %p600 = scmp.lt.s32.totalorder %s39, 1
        %s601 = scalar_select %p600, %s39, 1
        %s602 = smul.addr %s601, 4
        %s603 = smul.addr %s602, 4
        %s604 = scalar_lea.vmem %s4, %s603
        %p605 = pneg %p171
        %p606 = pneg %p168
        %p607 = scmp.lt.s32.totalorder %s39, 1
        %s608 = scalar_select %p607, %s39, 1
        %s609 = scalar_lea.vmem %s5, %s608
        %p610 = pneg %p197
        %p611 = pneg %p194
        %p612 = scmp.lt.s32.totalorder %s39, 1
        %s613 = scalar_select %p612, %s39, 1
        %s614 = smul.addr %s613, 8
        %s615 = smul.addr %s614, 4
        %s616 = scalar_lea.vmem %s6, %s615
        %p617 = pneg %p223
        %p618 = pneg %p220
        %p619 = scmp.lt.s32.totalorder %s39, 1
        %s620 = scalar_select %p619, %s39, 1
        %s621 = scalar_lea.vmem %s7, %s620
        %p622 = pneg %p249
        %p623 = pneg %p246
        %p624 = scmp.lt.s32.totalorder %s39, 1
        %s625 = scalar_select %p624, %s39, 1
        %s626 = scalar_lea.vmem %s8, %s625
        %p627 = pneg %p275
        %p628 = pneg %p272
        %p629 = scmp.lt.s32.totalorder %s39, 1
        %s630 = scalar_select %p629, %s39, 1
        %s631 = scalar_lea.vmem %s9, %s630
        %p632 = pneg %p301
        %p633 = pneg %p298
        %p634 = scmp.lt.s32.totalorder %s39, 1
        %s635 = scalar_select %p634, %s39, 1
        %s636 = scalar_lea.vmem %s10, %s635
        %p637 = pneg %p327
        %p638 = pneg %p324
        %p639 = scmp.lt.s32.totalorder %s39, 1
        %s640 = scalar_select %p639, %s39, 1
        %s641 = scalar_lea.vmem %s11, %s640
        %p642 = pneg %p353
        %p643 = pneg %p350
        %p644 = pneg %p374
        %p645 = pneg %p371
        %p646 = pneg %p395
        %p647 = pneg %p392
        %p648 = pneg %p421
        %p649 = pneg %p418
        %s650 = sand.u32 %s408, 1
        %s651 = scalar_lea.sflag [#allocation4], %s650
        %s652 = sand.u32 %s408, 1
        %s653 = smul.addr %s652, 8
        %s654 = scalar_lea.vmem [#allocation7], %s653
        %p655 = scmp.lt.s32.totalorder %s39, 1
        %s656 = scalar_select %p655, %s39, 1
        %s657 = smul.addr %s656, 4
        %s658 = smul.addr %s657, 4
        %s659 = scalar_lea.vmem %s2, %s658
        %p660 = scmp.lt.s32.totalorder %s39, 1
        %s661 = scalar_select %p660, %s39, 1
        %s662 = smul.addr %s661, 4
        %s663 = smul.addr %s662, 4
        %s664 = scalar_lea.vmem %s3, %s663
        %p665 = scmp.lt.s32.totalorder %s39, 1
        %s666 = scalar_select %p665, %s39, 1
        %s667 = smul.addr %s666, 4
        %s668 = smul.addr %s667, 4
        %s669 = scalar_lea.vmem %s4, %s668
        %p670 = scmp.lt.s32.totalorder %s39, 1
        %s671 = scalar_select %p670, %s39, 1
        %s672 = scalar_lea.vmem %s5, %s671
        %p673 = scmp.lt.s32.totalorder %s39, 1
        %s674 = scalar_select %p673, %s39, 1
        %s675 = smul.addr %s674, 8
        %s676 = smul.addr %s675, 4
        %s677 = scalar_lea.vmem %s6, %s676
        %p678 = scmp.lt.s32.totalorder %s39, 1
        %s679 = scalar_select %p678, %s39, 1
        %s680 = scalar_lea.vmem %s7, %s679
        %p681 = scmp.lt.s32.totalorder %s39, 1
        %s682 = scalar_select %p681, %s39, 1
        %s683 = scalar_lea.vmem %s8, %s682
        %p684 = scmp.lt.s32.totalorder %s39, 1
        %s685 = scalar_select %p684, %s39, 1
        %s686 = scalar_lea.vmem %s9, %s685
        %p687 = scmp.lt.s32.totalorder %s39, 1
        %s688 = scalar_select %p687, %s39, 1
        %s689 = scalar_lea.vmem %s10, %s688
        %p690 = scmp.lt.s32.totalorder %s39, 1
        %s691 = scalar_select %p690, %s39, 1
        %s692 = scalar_lea.vmem %s11, %s691
        %p694 = scmp.eq.s32.totalorder %s39, 0
        // Predicated region
        $region85: #{tpu_custom_call.1} parent=75 // pred_check
          %p695 = pneg %p694
        $region86: #{tpu_custom_call.1} parent=75 // pred_check_branch
          %697 = sbr.rel (%p695) target = $region88
        $region87: #{tpu_custom_call.1} parent=75 // pred_region
          %v698 = vld [vmem:[%s560] sm:$0xff]
          %vm699 = vcmask 261120
          %700 = vst.msk [vmem:[%s654] sm:$0xff] %vm699, %v698
        $region88: #{tpu_custom_call.1} parent=75 // pred_fallthru
          _
        %v701 = vld [vmem:[%s654] sm:$0xff]
        %v702 = vpack.c.bf16 %v701, %v701
        %v703 = vld [vmem:[%s659] sm:$0xf]
        %v704 = vld [vmem:[%s659 + $0x4] sm:$0xf]
        %v705 = vld [vmem:[%s659 + $0x8] sm:$0xf]
        %v706 = vld [vmem:[%s659 + $0xc] sm:$0xf]
        %v711 = vunpack.c.l.b16 %v703
        %v712 = vunpack.c.l.b16 %v704
        %v713 = vunpack.c.l.b16 %v705
        %v714 = vunpack.c.l.b16 %v706
        %v715 = vpack.c.b16 %v712, %v711
        %v716 = vpack.c.b16 %v714, %v713
        %vm719 = vcmask 261120
        %v721 = vsel %vm719, %v702, 0
        %723 = vmatprep.subr.bf16.mxu0 0
        %724 = vmatpush1.bf16.msra.mxu0 0
        %725 = vmatprep.subr.bf16.mxu0 0
        %726 = vmatpush1.bf16.msra.mxu0 0
        %727 = vmatprep.subr.bf16.mxu0 0
        %728 = vmatpush1.bf16.msra.mxu0 0
        %729 = vmatprep.subr.bf16.mxu0 0
        %730 = vmatpush1.bf16.msra.mxu0 0
        %731 = vmatprep.subr.bf16.mxu0 0
        %732 = vmatpush1.bf16.msra.mxu0 0
        %733 = vmatprep.subr.bf16.mxu0 0
        %734 = vmatpush1.bf16.msra.mxu0 0
        %735 = vmatprep.subr.bf16.mxu0 0
        %736 = vmatpush1.bf16.msra.mxu0 %v716
        %737 = vmatprep.subr.bf16.mxu0 0
        %738 = vmatpush1.bf16.msra.mxu0 %v715
        %739 = vmatprep.subr.bf16.mxu0 0
        %740 = vmatpush2.bf16.msra.mxu0 0
        %741 = vmatprep.subr.bf16.mxu0 0
        %742 = vmatpush2.bf16.msra.mxu0 0
        %743 = vmatprep.subr.bf16.mxu0 0
        %744 = vmatpush2.bf16.msra.mxu0 0
        %745 = vmatprep.subr.bf16.mxu0 0
        %746 = vmatpush2.bf16.msra.mxu0 0
        %747 = vmatprep.subr.bf16.mxu0 0
        %748 = vmatpush2.bf16.msra.mxu0 0
        %749 = vmatprep.subr.bf16.mxu0 0
        %750 = vmatpush2.bf16.msra.mxu0 0
        %751 = vmatprep.subr.bf16.mxu0 0
        %752 = vmatpush2.bf16.msra.mxu0 0
        %753 = vmatprep.subr.bf16.mxu0 0
        %754 = vmatpush2.bf16.msra.mxu0 0
        %755 = vmatprep.mubr.bf16.mxu0 0
        %756 = vmatmul.mubr.bf16.gmra.mxu0 %v721
        %v757 = vpop.f32.mrf.mxu0
        %v758 = vadd.f32 0.0, %v757
        %v759 = vpop.f32.mrf.mxu0
        %v760 = vpop.f32.mrf.mxu0
        %v761 = vpop.f32.mrf.mxu0
        %762 = vdwg.mxu0
        %764 = vrot.lane.b32.xlu0 %v758, 120
        %v765 = vpop.permute.xlu0 %764
        %767 = vrot.lane.b32.xlu0 %v758, 112
        %v768 = vpop.permute.xlu0 %767
        %770 = vrot.lane.b32.xlu0 %v758, 104
        %v771 = vpop.permute.xlu0 %770
        %v773 = vpack.c.bf16 %v758, %v758
        %v774 = vpack.c.bf16 %v765, %v765
        %v775 = vpack.c.bf16 %v768, %v768
        %v776 = vpack.c.bf16 %v771, %v771
        %v777 = vld [vmem:[%s568] sm:$0x1]
        %779 = vrot.lane.b32.xlu0 %v773, 96
        %v780 = vpop.permute.xlu0 %779
        %vm781 = vcmask 64512
        %v783 = vsel %vm781, %v773, 0
        %v786 = vsel %vm781, %v780, 0
        %788 = vmatprep.subr.bf16.mxu0 0
        %789 = vmatpush1.bf16.xpose.msra.mxu0 0
        %790 = vmatprep.subr.bf16.mxu0 0
        %791 = vmatpush1.bf16.xpose.msra.mxu0 0
        %792 = vmatprep.subr.bf16.mxu0 0
        %793 = vmatpush1.bf16.xpose.msra.mxu0 0
        %794 = vmatprep.subr.bf16.mxu0 0
        %795 = vmatpush1.bf16.xpose.msra.mxu0 0
        %796 = vmatprep.subr.bf16.mxu0 0
        %797 = vmatpush1.bf16.xpose.msra.mxu0 0
        %798 = vmatprep.subr.bf16.mxu0 0
        %799 = vmatpush1.bf16.xpose.msra.mxu0 0
        %800 = vmatprep.subr.bf16.mxu0 0
        %801 = vmatpush1.bf16.xpose.msra.mxu0 0
        %802 = vmatprep.subr.bf16.mxu0 0
        %803 = vmatpush1.bf16.xpose.msra.mxu0 %v786
        %804 = vmatprep.subr.bf16.mxu0 0
        %805 = vmatpush2.bf16.xpose.msra.mxu0 0
        %806 = vmatprep.subr.bf16.mxu0 0
        %807 = vmatpush2.bf16.xpose.msra.mxu0 0
        %808 = vmatprep.subr.bf16.mxu0 0
        %809 = vmatpush2.bf16.xpose.msra.mxu0 0
        %810 = vmatprep.subr.bf16.mxu0 0
        %811 = vmatpush2.bf16.xpose.msra.mxu0 0
        %812 = vmatprep.subr.bf16.mxu0 0
        %813 = vmatpush2.bf16.xpose.msra.mxu0 0
        %814 = vmatprep.subr.bf16.mxu0 0
        %815 = vmatpush2.bf16.xpose.msra.mxu0 0
        %816 = vmatprep.subr.bf16.mxu0 0
        %817 = vmatpush2.bf16.xpose.msra.mxu0 0
        %818 = vmatprep.subr.bf16.mxu0 0
        %819 = vmatpush2.bf16.xpose.msra.mxu0 0
        %820 = vmatprep.mubr.bf16.mxu0 0
        %821 = vmatmul.mubr.bf16.gmra.mxu0 %v783
        %v822 = vpop.f32.mrf.mxu0
        %v823 = vadd.f32 0.0, %v822
        %v824 = vpop.f32.mrf.mxu0
        %v825 = vpop.f32.mrf.mxu0
        %v826 = vpop.f32.mrf.mxu0
        %827 = vdwg.mxu0
        %829 = vrot.lane.b32.xlu0 %v774, 96
        %v830 = vpop.permute.xlu0 %829
        %v832 = vsel %vm781, %v774, 0
        %v835 = vsel %vm781, %v830, 0
        %837 = vmatprep.subr.bf16.mxu0 0
        %838 = vmatpush1.bf16.xpose.msra.mxu0 0
        %839 = vmatprep.subr.bf16.mxu0 0
        %840 = vmatpush1.bf16.xpose.msra.mxu0 0
        %841 = vmatprep.subr.bf16.mxu0 0
        %842 = vmatpush1.bf16.xpose.msra.mxu0 0
        %843 = vmatprep.subr.bf16.mxu0 0
        %844 = vmatpush1.bf16.xpose.msra.mxu0 0
        %845 = vmatprep.subr.bf16.mxu0 0
        %846 = vmatpush1.bf16.xpose.msra.mxu0 0
        %847 = vmatprep.subr.bf16.mxu0 0
        %848 = vmatpush1.bf16.xpose.msra.mxu0 0
        %849 = vmatprep.subr.bf16.mxu0 0
        %850 = vmatpush1.bf16.xpose.msra.mxu0 0
        %851 = vmatprep.subr.bf16.mxu0 0
        %852 = vmatpush1.bf16.xpose.msra.mxu0 %v835
        %853 = vmatprep.subr.bf16.mxu0 0
        %854 = vmatpush2.bf16.xpose.msra.mxu0 0
        %855 = vmatprep.subr.bf16.mxu0 0
        %856 = vmatpush2.bf16.xpose.msra.mxu0 0
        %857 = vmatprep.subr.bf16.mxu0 0
        %858 = vmatpush2.bf16.xpose.msra.mxu0 0
        %859 = vmatprep.subr.bf16.mxu0 0
        %860 = vmatpush2.bf16.xpose.msra.mxu0 0
        %861 = vmatprep.subr.bf16.mxu0 0
        %862 = vmatpush2.bf16.xpose.msra.mxu0 0
        %863 = vmatprep.subr.bf16.mxu0 0
        %864 = vmatpush2.bf16.xpose.msra.mxu0 0
        %865 = vmatprep.subr.bf16.mxu0 0
        %866 = vmatpush2.bf16.xpose.msra.mxu0 0
        %867 = vmatprep.subr.bf16.mxu0 0
        %868 = vmatpush2.bf16.xpose.msra.mxu0 0
        %869 = vmatprep.mubr.bf16.mxu0 0
        %870 = vmatmul.mubr.bf16.gmra.mxu0 %v832
        %v871 = vpop.f32.mrf.mxu0
        %v872 = vadd.f32 0.0, %v871
        %v873 = vpop.f32.mrf.mxu0
        %v874 = vpop.f32.mrf.mxu0
        %v875 = vpop.f32.mrf.mxu0
        %876 = vdwg.mxu0
        %878 = vrot.lane.b32.xlu0 %v775, 96
        %v879 = vpop.permute.xlu0 %878
        %v881 = vsel %vm781, %v775, 0
        %v884 = vsel %vm781, %v879, 0
        %886 = vmatprep.subr.bf16.mxu0 0
        %887 = vmatpush1.bf16.xpose.msra.mxu0 0
        %888 = vmatprep.subr.bf16.mxu0 0
        %889 = vmatpush1.bf16.xpose.msra.mxu0 0
        %890 = vmatprep.subr.bf16.mxu0 0
        %891 = vmatpush1.bf16.xpose.msra.mxu0 0
        %892 = vmatprep.subr.bf16.mxu0 0
        %893 = vmatpush1.bf16.xpose.msra.mxu0 0
        %894 = vmatprep.subr.bf16.mxu0 0
        %895 = vmatpush1.bf16.xpose.msra.mxu0 0
        %896 = vmatprep.subr.bf16.mxu0 0
        %897 = vmatpush1.bf16.xpose.msra.mxu0 0
        %898 = vmatprep.subr.bf16.mxu0 0
        %899 = vmatpush1.bf16.xpose.msra.mxu0 0
        %900 = vmatprep.subr.bf16.mxu0 0
        %901 = vmatpush1.bf16.xpose.msra.mxu0 %v884
        %902 = vmatprep.subr.bf16.mxu0 0
        %903 = vmatpush2.bf16.xpose.msra.mxu0 0
        %904 = vmatprep.subr.bf16.mxu0 0
        %905 = vmatpush2.bf16.xpose.msra.mxu0 0
        %906 = vmatprep.subr.bf16.mxu0 0
        %907 = vmatpush2.bf16.xpose.msra.mxu0 0
        %908 = vmatprep.subr.bf16.mxu0 0
        %909 = vmatpush2.bf16.xpose.msra.mxu0 0
        %910 = vmatprep.subr.bf16.mxu0 0
        %911 = vmatpush2.bf16.xpose.msra.mxu0 0
        %912 = vmatprep.subr.bf16.mxu0 0
        %913 = vmatpush2.bf16.xpose.msra.mxu0 0
        %914 = vmatprep.subr.bf16.mxu0 0
        %915 = vmatpush2.bf16.xpose.msra.mxu0 0
        %916 = vmatprep.subr.bf16.mxu0 0
        %917 = vmatpush2.bf16.xpose.msra.mxu0 0
        %918 = vmatprep.mubr.bf16.mxu0 0
        %919 = vmatmul.mubr.bf16.gmra.mxu0 %v881
        %v920 = vpop.f32.mrf.mxu0
        %v921 = vadd.f32 0.0, %v920
        %v922 = vpop.f32.mrf.mxu0
        %v923 = vpop.f32.mrf.mxu0
        %v924 = vpop.f32.mrf.mxu0
        %925 = vdwg.mxu0
        %927 = vrot.lane.b32.xlu0 %v776, 96
        %v928 = vpop.permute.xlu0 %927
        %v930 = vsel %vm781, %v776, 0
        %v933 = vsel %vm781, %v928, 0
        %935 = vmatprep.subr.bf16.mxu0 0
        %936 = vmatpush1.bf16.xpose.msra.mxu0 0
        %937 = vmatprep.subr.bf16.mxu0 0
        %938 = vmatpush1.bf16.xpose.msra.mxu0 0
        %939 = vmatprep.subr.bf16.mxu0 0
        %940 = vmatpush1.bf16.xpose.msra.mxu0 0
        %941 = vmatprep.subr.bf16.mxu0 0
        %942 = vmatpush1.bf16.xpose.msra.mxu0 0
        %943 = vmatprep.subr.bf16.mxu0 0
        %944 = vmatpush1.bf16.xpose.msra.mxu0 0
        %945 = vmatprep.subr.bf16.mxu0 0
        %946 = vmatpush1.bf16.xpose.msra.mxu0 0
        %947 = vmatprep.subr.bf16.mxu0 0
        %948 = vmatpush1.bf16.xpose.msra.mxu0 0
        %949 = vmatprep.subr.bf16.mxu0 0
        %950 = vmatpush1.bf16.xpose.msra.mxu0 %v933
        %951 = vmatprep.subr.bf16.mxu0 0
        %952 = vmatpush2.bf16.xpose.msra.mxu0 0
        %953 = vmatprep.subr.bf16.mxu0 0
        %954 = vmatpush2.bf16.xpose.msra.mxu0 0
        %955 = vmatprep.subr.bf16.mxu0 0
        %956 = vmatpush2.bf16.xpose.msra.mxu0 0
        %957 = vmatprep.subr.bf16.mxu0 0
        %958 = vmatpush2.bf16.xpose.msra.mxu0 0
        %959 = vmatprep.subr.bf16.mxu0 0
        %960 = vmatpush2.bf16.xpose.msra.mxu0 0
        %961 = vmatprep.subr.bf16.mxu0 0
        %962 = vmatpush2.bf16.xpose.msra.mxu0 0
        %963 = vmatprep.subr.bf16.mxu0 0
        %964 = vmatpush2.bf16.xpose.msra.mxu0 0
        %965 = vmatprep.subr.bf16.mxu0 0
        %966 = vmatpush2.bf16.xpose.msra.mxu0 0
        %967 = vmatprep.mubr.bf16.mxu0 0
        %968 = vmatmul.mubr.bf16.gmra.mxu0 %v930
        %v969 = vpop.f32.mrf.mxu0
        %v970 = vadd.f32 0.0, %v969
        %v971 = vpop.f32.mrf.mxu0
        %v972 = vpop.f32.mrf.mxu0
        %v973 = vpop.f32.mrf.mxu0
        %974 = vdwg.mxu0
        %v975 = vmul.f32 %v823, 0.35355338
        %v976 = vmul.f32 %v872, 0.35355338
        %v977 = vmul.f32 %v921, 0.35355338
        %v978 = vmul.f32 %v970, 0.35355338
        %v980 = vlaneseq
        %v981 = vshrl.u32 %v980, 7
        %v982 = vsub.s32 0, %v981
        %v983 = vrot.slane %v777, %v982
        %v985 = vadd.f32 %v975, %v983
        %v986 = vadd.f32 %v976, %v983
        %v987 = vadd.f32 %v977, %v983
        %v988 = vadd.f32 %v978, %v983
        %v989 = vsel %vm781, %v985, -inf
        %990 = vmax.xlane.f32.xlu0 %v989
        %v991 = vpop.xlane.xlu0 %990
        %v992 = vsel %vm781, %v986, -inf
        %993 = vmax.xlane.f32.xlu0 %v992
        %v994 = vpop.xlane.xlu0 %993
        %v995 = vsel %vm781, %v987, -inf
        %996 = vmax.xlane.f32.xlu0 %v995
        %v997 = vpop.xlane.xlu0 %996
        %v998 = vsel %vm781, %v988, -inf
        %999 = vmax.xlane.f32.xlu0 %v998
        %v1000 = vpop.xlane.xlu0 %999
        %v1001 = vsub.f32 %v985, %v991
        %v1002 = vsub.f32 %v986, %v994
        %v1003 = vsub.f32 %v987, %v997
        %v1004 = vsub.f32 %v988, %v1000
        %v1005 = vmul.f32 %v1001, 1.442695
        %v1006 = vpow.pop %v1005
        %v1007 = vmul.f32 %v1002, 1.442695
        %v1008 = vpow.pop %v1007
        %v1009 = vmul.f32 %v1003, 1.442695
        %v1010 = vpow.pop %v1009
        %v1011 = vmul.f32 %v1004, 1.442695
        %v1012 = vpow.pop %v1011
        %v1013 = vsel %vm781, %v1006, 0.0
        %1014 = vadd.xlane.f32.xlu0 %v1013
        %v1015 = vpop.xlane.xlu0 %1014
        %v1016 = vsel %vm781, %v1008, 0.0
        %1017 = vadd.xlane.f32.xlu0 %v1016
        %v1018 = vpop.xlane.xlu0 %1017
        %v1019 = vsel %vm781, %v1010, 0.0
        %1020 = vadd.xlane.f32.xlu0 %v1019
        %v1021 = vpop.xlane.xlu0 %1020
        %v1022 = vsel %vm781, %v1012, 0.0
        %1023 = vadd.xlane.f32.xlu0 %v1022
        %v1024 = vpop.xlane.xlu0 %1023
        %v1025 = vrcp.pop %v1015
        %v1026 = vrcp.pop %v1018
        %v1027 = vrcp.pop %v1021
        %v1028 = vrcp.pop %v1024
        %v1029 = vmul.f32 %v1006, %v1025
        %v1030 = vmul.f32 %v1008, %v1026
        %v1031 = vmul.f32 %v1010, %v1027
        %v1032 = vmul.f32 %v1012, %v1028
        %v1033 = vpack.c.bf16 %v1029, %v1029
        %v1034 = vpack.c.bf16 %v1030, %v1030
        %v1035 = vpack.c.bf16 %v1031, %v1031
        %v1036 = vpack.c.bf16 %v1032, %v1032
        %1037 = vrot.lane.b32.xlu0 %v773, 64
        %v1038 = vpop.permute.xlu0 %1037
        %v1040 = vsel %vm781, %v1033, 0
        %vm1042 = vcmask 1043456
        %v1044 = vsel %vm1042, %v1038, 0
        %1046 = vmatprep.subr.bf16.mxu0 0
        %1047 = vmatpush1.bf16.msra.mxu0 0
        %1048 = vmatprep.subr.bf16.mxu0 0
        %1049 = vmatpush1.bf16.msra.mxu0 0
        %1050 = vmatprep.subr.bf16.mxu0 0
        %1051 = vmatpush1.bf16.msra.mxu0 0
        %1052 = vmatprep.subr.bf16.mxu0 0
        %1053 = vmatpush1.bf16.msra.mxu0 0
        %1054 = vmatprep.subr.bf16.mxu0 0
        %1055 = vmatpush1.bf16.msra.mxu0 0
        %1056 = vmatprep.subr.bf16.mxu0 0
        %1057 = vmatpush1.bf16.msra.mxu0 0
        %1058 = vmatprep.subr.bf16.mxu0 0
        %1059 = vmatpush1.bf16.msra.mxu0 0
        %1060 = vmatprep.subr.bf16.mxu0 0
        %1061 = vmatpush1.bf16.msra.mxu0 %v1044
        %1062 = vmatprep.subr.bf16.mxu0 0
        %1063 = vmatpush2.bf16.msra.mxu0 0
        %1064 = vmatprep.subr.bf16.mxu0 0
        %1065 = vmatpush2.bf16.msra.mxu0 0
        %1066 = vmatprep.subr.bf16.mxu0 0
        %1067 = vmatpush2.bf16.msra.mxu0 0
        %1068 = vmatprep.subr.bf16.mxu0 0
        %1069 = vmatpush2.bf16.msra.mxu0 0
        %1070 = vmatprep.subr.bf16.mxu0 0
        %1071 = vmatpush2.bf16.msra.mxu0 0
        %1072 = vmatprep.subr.bf16.mxu0 0
        %1073 = vmatpush2.bf16.msra.mxu0 0
        %1074 = vmatprep.subr.bf16.mxu0 0
        %1075 = vmatpush2.bf16.msra.mxu0 0
        %1076 = vmatprep.subr.bf16.mxu0 0
        %1077 = vmatpush2.bf16.msra.mxu0 0
        %1078 = vmatprep.mubr.bf16.mxu0 0
        %1079 = vmatmul.mubr.bf16.gmra.mxu0 %v1040
        %v1080 = vpop.f32.mrf.mxu0
        %v1081 = vadd.f32 0.0, %v1080
        %v1082 = vpop.f32.mrf.mxu0
        %v1083 = vpop.f32.mrf.mxu0
        %v1084 = vpop.f32.mrf.mxu0
        %1085 = vdwg.mxu0
        %1086 = vrot.lane.b32.xlu0 %v774, 64
        %v1087 = vpop.permute.xlu0 %1086
        %v1089 = vsel %vm781, %v1034, 0
        %v1092 = vsel %vm1042, %v1087, 0
        %1094 = vmatprep.subr.bf16.mxu0 0
        %1095 = vmatpush1.bf16.msra.mxu0 0
        %1096 = vmatprep.subr.bf16.mxu0 0
        %1097 = vmatpush1.bf16.msra.mxu0 0
        %1098 = vmatprep.subr.bf16.mxu0 0
        %1099 = vmatpush1.bf16.msra.mxu0 0
        %1100 = vmatprep.subr.bf16.mxu0 0
        %1101 = vmatpush1.bf16.msra.mxu0 0
        %1102 = vmatprep.subr.bf16.mxu0 0
        %1103 = vmatpush1.bf16.msra.mxu0 0
        %1104 = vmatprep.subr.bf16.mxu0 0
        %1105 = vmatpush1.bf16.msra.mxu0 0
        %1106 = vmatprep.subr.bf16.mxu0 0
        %1107 = vmatpush1.bf16.msra.mxu0 0
        %1108 = vmatprep.subr.bf16.mxu0 0
        %1109 = vmatpush1.bf16.msra.mxu0 %v1092
        %1110 = vmatprep.subr.bf16.mxu0 0
        %1111 = vmatpush2.bf16.msra.mxu0 0
        %1112 = vmatprep.subr.bf16.mxu0 0
        %1113 = vmatpush2.bf16.msra.mxu0 0
        %1114 = vmatprep.subr.bf16.mxu0 0
        %1115 = vmatpush2.bf16.msra.mxu0 0
        %1116 = vmatprep.subr.bf16.mxu0 0
        %1117 = vmatpush2.bf16.msra.mxu0 0
        %1118 = vmatprep.subr.bf16.mxu0 0
        %1119 = vmatpush2.bf16.msra.mxu0 0
        %1120 = vmatprep.subr.bf16.mxu0 0
        %1121 = vmatpush2.bf16.msra.mxu0 0
        %1122 = vmatprep.subr.bf16.mxu0 0
        %1123 = vmatpush2.bf16.msra.mxu0 0
        %1124 = vmatprep.subr.bf16.mxu0 0
        %1125 = vmatpush2.bf16.msra.mxu0 0
        %1126 = vmatprep.mubr.bf16.mxu0 0
        %1127 = vmatmul.mubr.bf16.gmra.mxu0 %v1089
        %v1128 = vpop.f32.mrf.mxu0
        %v1129 = vadd.f32 0.0, %v1128
        %v1130 = vpop.f32.mrf.mxu0
        %v1131 = vpop.f32.mrf.mxu0
        %v1132 = vpop.f32.mrf.mxu0
        %1133 = vdwg.mxu0
        %1134 = vrot.lane.b32.xlu0 %v775, 64
        %v1135 = vpop.permute.xlu0 %1134
        %v1137 = vsel %vm781, %v1035, 0
        %v1140 = vsel %vm1042, %v1135, 0
        %1142 = vmatprep.subr.bf16.mxu0 0
        %1143 = vmatpush1.bf16.msra.mxu0 0
        %1144 = vmatprep.subr.bf16.mxu0 0
        %1145 = vmatpush1.bf16.msra.mxu0 0
        %1146 = vmatprep.subr.bf16.mxu0 0
        %1147 = vmatpush1.bf16.msra.mxu0 0
        %1148 = vmatprep.subr.bf16.mxu0 0
        %1149 = vmatpush1.bf16.msra.mxu0 0
        %1150 = vmatprep.subr.bf16.mxu0 0
        %1151 = vmatpush1.bf16.msra.mxu0 0
        %1152 = vmatprep.subr.bf16.mxu0 0
        %1153 = vmatpush1.bf16.msra.mxu0 0
        %1154 = vmatprep.subr.bf16.mxu0 0
        %1155 = vmatpush1.bf16.msra.mxu0 0
        %1156 = vmatprep.subr.bf16.mxu0 0
        %1157 = vmatpush1.bf16.msra.mxu0 %v1140
        %1158 = vmatprep.subr.bf16.mxu0 0
        %1159 = vmatpush2.bf16.msra.mxu0 0
        %1160 = vmatprep.subr.bf16.mxu0 0
        %1161 = vmatpush2.bf16.msra.mxu0 0
        %1162 = vmatprep.subr.bf16.mxu0 0
        %1163 = vmatpush2.bf16.msra.mxu0 0
        %1164 = vmatprep.subr.bf16.mxu0 0
        %1165 = vmatpush2.bf16.msra.mxu0 0
        %1166 = vmatprep.subr.bf16.mxu0 0
        %1167 = vmatpush2.bf16.msra.mxu0 0
        %1168 = vmatprep.subr.bf16.mxu0 0
        %1169 = vmatpush2.bf16.msra.mxu0 0
        %1170 = vmatprep.subr.bf16.mxu0 0
        %1171 = vmatpush2.bf16.msra.mxu0 0
        %1172 = vmatprep.subr.bf16.mxu0 0
        %1173 = vmatpush2.bf16.msra.mxu0 0
        %1174 = vmatprep.mubr.bf16.mxu0 0
        %1175 = vmatmul.mubr.bf16.gmra.mxu0 %v1137
        %v1176 = vpop.f32.mrf.mxu0
        %v1177 = vadd.f32 0.0, %v1176
        %v1178 = vpop.f32.mrf.mxu0
        %v1179 = vpop.f32.mrf.mxu0
        %v1180 = vpop.f32.mrf.mxu0
        %1181 = vdwg.mxu0
        %1182 = vrot.lane.b32.xlu0 %v776, 64
        %v1183 = vpop.permute.xlu0 %1182
        %v1185 = vsel %vm781, %v1036, 0
        %v1188 = vsel %vm1042, %v1183, 0
        %1190 = vmatprep.subr.bf16.mxu0 0
        %1191 = vmatpush1.bf16.msra.mxu0 0
        %1192 = vmatprep.subr.bf16.mxu0 0
        %1193 = vmatpush1.bf16.msra.mxu0 0
        %1194 = vmatprep.subr.bf16.mxu0 0
        %1195 = vmatpush1.bf16.msra.mxu0 0
        %1196 = vmatprep.subr.bf16.mxu0 0
        %1197 = vmatpush1.bf16.msra.mxu0 0
        %1198 = vmatprep.subr.bf16.mxu0 0
        %1199 = vmatpush1.bf16.msra.mxu0 0
        %1200 = vmatprep.subr.bf16.mxu0 0
        %1201 = vmatpush1.bf16.msra.mxu0 0
        %1202 = vmatprep.subr.bf16.mxu0 0
        %1203 = vmatpush1.bf16.msra.mxu0 0
        %1204 = vmatprep.subr.bf16.mxu0 0
        %1205 = vmatpush1.bf16.msra.mxu0 %v1188
        %1206 = vmatprep.subr.bf16.mxu0 0
        %1207 = vmatpush2.bf16.msra.mxu0 0
        %1208 = vmatprep.subr.bf16.mxu0 0
        %1209 = vmatpush2.bf16.msra.mxu0 0
        %1210 = vmatprep.subr.bf16.mxu0 0
        %1211 = vmatpush2.bf16.msra.mxu0 0
        %1212 = vmatprep.subr.bf16.mxu0 0
        %1213 = vmatpush2.bf16.msra.mxu0 0
        %1214 = vmatprep.subr.bf16.mxu0 0
        %1215 = vmatpush2.bf16.msra.mxu0 0
        %1216 = vmatprep.subr.bf16.mxu0 0
        %1217 = vmatpush2.bf16.msra.mxu0 0
        %1218 = vmatprep.subr.bf16.mxu0 0
        %1219 = vmatpush2.bf16.msra.mxu0 0
        %1220 = vmatprep.subr.bf16.mxu0 0
        %1221 = vmatpush2.bf16.msra.mxu0 0
        %1222 = vmatprep.mubr.bf16.mxu0 0
        %1223 = vmatmul.mubr.bf16.gmra.mxu0 %v1185
        %v1224 = vpop.f32.mrf.mxu0
        %v1225 = vadd.f32 0.0, %v1224
        %v1226 = vpop.f32.mrf.mxu0
        %v1227 = vpop.f32.mrf.mxu0
        %v1228 = vpop.f32.mrf.mxu0
        %1229 = vdwg.mxu0
        %v1230 = vpack.c.bf16 %v1081, %v1081
        %v1231 = vpack.c.bf16 %v1129, %v1129
        %v1232 = vpack.c.bf16 %v1177, %v1177
        %v1233 = vpack.c.bf16 %v1225, %v1225
        %v1234 = vld [vmem:[%s664] sm:$0xf]
        %v1235 = vld [vmem:[%s664 + $0x4] sm:$0xf]
        %v1236 = vld [vmem:[%s664 + $0x8] sm:$0xf]
        %v1237 = vld [vmem:[%s664 + $0xc] sm:$0xf]
        %v1239 = vsel %vm781, %v1230, 0
        %v1242 = vsel %vm1042, %v1234, 0
        %1244 = vmatprep.subr.bf16.mxu0 0
        %1245 = vmatpush1.bf16.msra.mxu0 0
        %1246 = vmatprep.subr.bf16.mxu0 0
        %1247 = vmatpush1.bf16.msra.mxu0 0
        %1248 = vmatprep.subr.bf16.mxu0 0
        %1249 = vmatpush1.bf16.msra.mxu0 0
        %1250 = vmatprep.subr.bf16.mxu0 0
        %1251 = vmatpush1.bf16.msra.mxu0 0
        %1252 = vmatprep.subr.bf16.mxu0 0
        %1253 = vmatpush1.bf16.msra.mxu0 0
        %1254 = vmatprep.subr.bf16.mxu0 0
        %1255 = vmatpush1.bf16.msra.mxu0 0
        %1256 = vmatprep.subr.bf16.mxu0 0
        %1257 = vmatpush1.bf16.msra.mxu0 0
        %1258 = vmatprep.subr.bf16.mxu0 0
        %1259 = vmatpush1.bf16.msra.mxu0 %v1242
        %1260 = vmatprep.subr.bf16.mxu0 0
        %1261 = vmatpush2.bf16.msra.mxu0 0
        %1262 = vmatprep.subr.bf16.mxu0 0
        %1263 = vmatpush2.bf16.msra.mxu0 0
        %1264 = vmatprep.subr.bf16.mxu0 0
        %1265 = vmatpush2.bf16.msra.mxu0 0
        %1266 = vmatprep.subr.bf16.mxu0 0
        %1267 = vmatpush2.bf16.msra.mxu0 0
        %1268 = vmatprep.subr.bf16.mxu0 0
        %1269 = vmatpush2.bf16.msra.mxu0 0
        %1270 = vmatprep.subr.bf16.mxu0 0
        %1271 = vmatpush2.bf16.msra.mxu0 0
        %1272 = vmatprep.subr.bf16.mxu0 0
        %1273 = vmatpush2.bf16.msra.mxu0 0
        %1274 = vmatprep.subr.bf16.mxu0 0
        %1275 = vmatpush2.bf16.msra.mxu0 0
        %1276 = vmatprep.mubr.bf16.mxu0 0
        %1277 = vmatmul.mubr.bf16.gmra.mxu0 %v1239
        %v1278 = vpop.f32.mrf.mxu0
        %v1279 = vadd.f32 0.0, %v1278
        %v1280 = vpop.f32.mrf.mxu0
        %v1281 = vpop.f32.mrf.mxu0
        %v1282 = vpop.f32.mrf.mxu0
        %1283 = vdwg.mxu0
        %v1285 = vsel %vm781, %v1231, 0
        %v1288 = vsel %vm1042, %v1235, 0
        %1290 = vmatprep.subr.bf16.mxu0 0
        %1291 = vmatpush1.bf16.msra.mxu0 0
        %1292 = vmatprep.subr.bf16.mxu0 0
        %1293 = vmatpush1.bf16.msra.mxu0 0
        %1294 = vmatprep.subr.bf16.mxu0 0
        %1295 = vmatpush1.bf16.msra.mxu0 0
        %1296 = vmatprep.subr.bf16.mxu0 0
        %1297 = vmatpush1.bf16.msra.mxu0 0
        %1298 = vmatprep.subr.bf16.mxu0 0
        %1299 = vmatpush1.bf16.msra.mxu0 0
        %1300 = vmatprep.subr.bf16.mxu0 0
        %1301 = vmatpush1.bf16.msra.mxu0 0
        %1302 = vmatprep.subr.bf16.mxu0 0
        %1303 = vmatpush1.bf16.msra.mxu0 0
        %1304 = vmatprep.subr.bf16.mxu0 0
        %1305 = vmatpush1.bf16.msra.mxu0 %v1288
        %1306 = vmatprep.subr.bf16.mxu0 0
        %1307 = vmatpush2.bf16.msra.mxu0 0
        %1308 = vmatprep.subr.bf16.mxu0 0
        %1309 = vmatpush2.bf16.msra.mxu0 0
        %1310 = vmatprep.subr.bf16.mxu0 0
        %1311 = vmatpush2.bf16.msra.mxu0 0
        %1312 = vmatprep.subr.bf16.mxu0 0
        %1313 = vmatpush2.bf16.msra.mxu0 0
        %1314 = vmatprep.subr.bf16.mxu0 0
        %1315 = vmatpush2.bf16.msra.mxu0 0
        %1316 = vmatprep.subr.bf16.mxu0 0
        %1317 = vmatpush2.bf16.msra.mxu0 0
        %1318 = vmatprep.subr.bf16.mxu0 0
        %1319 = vmatpush2.bf16.msra.mxu0 0
        %1320 = vmatprep.subr.bf16.mxu0 0
        %1321 = vmatpush2.bf16.msra.mxu0 0
        %1322 = vmatprep.mubr.bf16.mxu0 0
        %1323 = vmatmul.mubr.bf16.gmra.mxu0 %v1285
        %v1324 = vpop.f32.mrf.mxu0
        %v1325 = vadd.f32 0.0, %v1324
        %v1326 = vpop.f32.mrf.mxu0
        %v1327 = vpop.f32.mrf.mxu0
        %v1328 = vpop.f32.mrf.mxu0
        %1329 = vdwg.mxu0
        %v1331 = vsel %vm781, %v1232, 0
        %v1334 = vsel %vm1042, %v1236, 0
        %1336 = vmatprep.subr.bf16.mxu0 0
        %1337 = vmatpush1.bf16.msra.mxu0 0
        %1338 = vmatprep.subr.bf16.mxu0 0
        %1339 = vmatpush1.bf16.msra.mxu0 0
        %1340 = vmatprep.subr.bf16.mxu0 0
        %1341 = vmatpush1.bf16.msra.mxu0 0
        %1342 = vmatprep.subr.bf16.mxu0 0
        %1343 = vmatpush1.bf16.msra.mxu0 0
        %1344 = vmatprep.subr.bf16.mxu0 0
        %1345 = vmatpush1.bf16.msra.mxu0 0
        %1346 = vmatprep.subr.bf16.mxu0 0
        %1347 = vmatpush1.bf16.msra.mxu0 0
        %1348 = vmatprep.subr.bf16.mxu0 0
        %1349 = vmatpush1.bf16.msra.mxu0 0
        %1350 = vmatprep.subr.bf16.mxu0 0
        %1351 = vmatpush1.bf16.msra.mxu0 %v1334
        %1352 = vmatprep.subr.bf16.mxu0 0
        %1353 = vmatpush2.bf16.msra.mxu0 0
        %1354 = vmatprep.subr.bf16.mxu0 0
        %1355 = vmatpush2.bf16.msra.mxu0 0
        %1356 = vmatprep.subr.bf16.mxu0 0
        %1357 = vmatpush2.bf16.msra.mxu0 0
        %1358 = vmatprep.subr.bf16.mxu0 0
        %1359 = vmatpush2.bf16.msra.mxu0 0
        %1360 = vmatprep.subr.bf16.mxu0 0
        %1361 = vmatpush2.bf16.msra.mxu0 0
        %1362 = vmatprep.subr.bf16.mxu0 0
        %1363 = vmatpush2.bf16.msra.mxu0 0
        %1364 = vmatprep.subr.bf16.mxu0 0
        %1365 = vmatpush2.bf16.msra.mxu0 0
        %1366 = vmatprep.subr.bf16.mxu0 0
        %1367 = vmatpush2.bf16.msra.mxu0 0
        %1368 = vmatprep.mubr.bf16.mxu0 0
        %1369 = vmatmul.mubr.bf16.gmra.mxu0 %v1331
        %v1370 = vpop.f32.mrf.mxu0
        %v1371 = vadd.f32 0.0, %v1370
        %v1372 = vpop.f32.mrf.mxu0
        %v1373 = vpop.f32.mrf.mxu0
        %v1374 = vpop.f32.mrf.mxu0
        %1375 = vdwg.mxu0
        %v1377 = vsel %vm781, %v1233, 0
        %v1380 = vsel %vm1042, %v1237, 0
        %1382 = vmatprep.subr.bf16.mxu0 0
        %1383 = vmatpush1.bf16.msra.mxu0 0
        %1384 = vmatprep.subr.bf16.mxu0 0
        %1385 = vmatpush1.bf16.msra.mxu0 0
        %1386 = vmatprep.subr.bf16.mxu0 0
        %1387 = vmatpush1.bf16.msra.mxu0 0
        %1388 = vmatprep.subr.bf16.mxu0 0
        %1389 = vmatpush1.bf16.msra.mxu0 0
        %1390 = vmatprep.subr.bf16.mxu0 0
        %1391 = vmatpush1.bf16.msra.mxu0 0
        %1392 = vmatprep.subr.bf16.mxu0 0
        %1393 = vmatpush1.bf16.msra.mxu0 0
        %1394 = vmatprep.subr.bf16.mxu0 0
        %1395 = vmatpush1.bf16.msra.mxu0 0
        %1396 = vmatprep.subr.bf16.mxu0 0
        %1397 = vmatpush1.bf16.msra.mxu0 %v1380
        %1398 = vmatprep.subr.bf16.mxu0 0
        %1399 = vmatpush2.bf16.msra.mxu0 0
        %1400 = vmatprep.subr.bf16.mxu0 0
        %1401 = vmatpush2.bf16.msra.mxu0 0
        %1402 = vmatprep.subr.bf16.mxu0 0
        %1403 = vmatpush2.bf16.msra.mxu0 0
        %1404 = vmatprep.subr.bf16.mxu0 0
        %1405 = vmatpush2.bf16.msra.mxu0 0
        %1406 = vmatprep.subr.bf16.mxu0 0
        %1407 = vmatpush2.bf16.msra.mxu0 0
        %1408 = vmatprep.subr.bf16.mxu0 0
        %1409 = vmatpush2.bf16.msra.mxu0 0
        %1410 = vmatprep.subr.bf16.mxu0 0
        %1411 = vmatpush2.bf16.msra.mxu0 0
        %1412 = vmatprep.subr.bf16.mxu0 0
        %1413 = vmatpush2.bf16.msra.mxu0 0
        %1414 = vmatprep.mubr.bf16.mxu0 0
        %1415 = vmatmul.mubr.bf16.gmra.mxu0 %v1377
        %v1416 = vpop.f32.mrf.mxu0
        %v1417 = vadd.f32 0.0, %v1416
        %v1418 = vpop.f32.mrf.mxu0
        %v1419 = vpop.f32.mrf.mxu0
        %v1420 = vpop.f32.mrf.mxu0
        %1421 = vdwg.mxu0
        %v1422 = vsel %vm719, %v1279, 0.0
        %v1423 = vsel %vm719, %v1325, 0.0
        %v1424 = vadd.f32 %v1422, %v1423
        %v1425 = vsel %vm719, %v1371, 0.0
        %v1426 = vadd.f32 %v1424, %v1425
        %v1427 = vsel %vm719, %v1417, 0.0
        %v1428 = vadd.f32 %v1426, %v1427
        %v1429 = vadd.f32 %v701, %v1428
        %v1430 = vld [vmem:[%s683] sm:$0x1]
        %v1431 = vld [vmem:[%s686] sm:$0x1]
        %v1432 = vsel %vm719, %v1429, 0.0
        %1433 = vadd.xlane.f32.xlu0 %v1432
        %v1434 = vpop.xlane.xlu0 %1433
        %v1435 = vrcp.pop 32.0
        %v1436 = vmul.f32 %v1434, %v1435
        %v1437 = vsub.f32 %v1429, %v1436
        %v1438 = vmul.f32 %v1437, %v1437
        %v1439 = vsel %vm719, %v1438, 0.0
        %1440 = vadd.xlane.f32.xlu0 %v1439
        %v1441 = vpop.xlane.xlu0 %1440
        %v1442 = vmul.f32 %v1441, %v1435
        %v1443 = vadd.f32 %v1442, 1e-05
        %v1444 = vrsqrt.pop %v1443
        %v1445 = vmul.f32 %v1437, %v1444
        %v1447 = vlaneseq
        %v1448 = vshrl.u32 %v1447, 7
        %v1449 = vsub.s32 0, %v1448
        %v1450 = vrot.slane %v1430, %v1449
        %v1452 = vmul.f32 %v1445, %v1450
        %v1454 = vlaneseq
        %v1455 = vshrl.u32 %v1454, 7
        %v1456 = vsub.s32 0, %v1455
        %v1457 = vrot.slane %v1431, %v1456
        %v1459 = vadd.f32 %v1452, %v1457
        %v1460 = vpack.c.bf16 %v1459, %v1459
        %v1461 = vld [vmem:[%s669] sm:$0xf]
        %v1462 = vld [vmem:[%s669 + $0x4] sm:$0xf]
        %v1463 = vld [vmem:[%s669 + $0x8] sm:$0xf]
        %v1464 = vld [vmem:[%s669 + $0xc] sm:$0xf]
        %v1465 = vld [vmem:[%s672] sm:$0x1]
        %v1467 = vlaneseq
        %v1468 = vshrl.u32 %v1467, 7
        %v1469 = vsub.s32 0, %v1468
        %v1470 = vrot.slane %v1465, %v1469
        %v1476 = vunpack.c.l.b16 %v1461
        %v1477 = vunpack.c.l.b16 %v1462
        %v1478 = vunpack.c.l.b16 %v1463
        %v1479 = vunpack.c.l.b16 %v1464
        %v1480 = vpack.c.b16 %v1477, %v1476
        %v1481 = vpack.c.b16 %v1479, %v1478
        %v1485 = vsel %vm719, %v1460, 0
        %1487 = vmatprep.subr.bf16.mxu0 0
        %1488 = vmatpush1.bf16.msra.mxu0 0
        %1489 = vmatprep.subr.bf16.mxu0 0
        %1490 = vmatpush1.bf16.msra.mxu0 0
        %1491 = vmatprep.subr.bf16.mxu0 0
        %1492 = vmatpush1.bf16.msra.mxu0 0
        %1493 = vmatprep.subr.bf16.mxu0 0
        %1494 = vmatpush1.bf16.msra.mxu0 0
        %1495 = vmatprep.subr.bf16.mxu0 0
        %1496 = vmatpush1.bf16.msra.mxu0 0
        %1497 = vmatprep.subr.bf16.mxu0 0
        %1498 = vmatpush1.bf16.msra.mxu0 0
        %1499 = vmatprep.subr.bf16.mxu0 0
        %1500 = vmatpush1.bf16.msra.mxu0 %v1481
        %1501 = vmatprep.subr.bf16.mxu0 0
        %1502 = vmatpush1.bf16.msra.mxu0 %v1480
        %1503 = vmatprep.subr.bf16.mxu0 0
        %1504 = vmatpush2.bf16.msra.mxu0 0
        %1505 = vmatprep.subr.bf16.mxu0 0
        %1506 = vmatpush2.bf16.msra.mxu0 0
        %1507 = vmatprep.subr.bf16.mxu0 0
        %1508 = vmatpush2.bf16.msra.mxu0 0
        %1509 = vmatprep.subr.bf16.mxu0 0
        %1510 = vmatpush2.bf16.msra.mxu0 0
        %1511 = vmatprep.subr.bf16.mxu0 0
        %1512 = vmatpush2.bf16.msra.mxu0 0
        %1513 = vmatprep.subr.bf16.mxu0 0
        %1514 = vmatpush2.bf16.msra.mxu0 0
        %1515 = vmatprep.subr.bf16.mxu0 0
        %1516 = vmatpush2.bf16.msra.mxu0 0
        %1517 = vmatprep.subr.bf16.mxu0 0
        %1518 = vmatpush2.bf16.msra.mxu0 0
        %1519 = vmatprep.mubr.bf16.mxu0 0
        %1520 = vmatmul.mubr.bf16.gmra.mxu0 %v1485
        %v1521 = vpop.f32.mrf.mxu0
        %v1522 = vadd.f32 %v1470, %v1521
        %v1523 = vpop.f32.mrf.mxu0
        %v1524 = vpop.f32.mrf.mxu0
        %v1525 = vpop.f32.mrf.mxu0
        %1526 = vdwg.mxu0
        %v1527 = vmax.f32 %v1522, 0.0
        %v1528 = vpack.c.bf16 %v1527, %v1527
        %v1529 = vld [vmem:[%s677] sm:$0xf]
        %v1530 = vld [vmem:[%s677 + $0x4] sm:$0xf]
        %v1531 = vld [vmem:[%s677 + $0x8] sm:$0xf]
        %v1532 = vld [vmem:[%s677 + $0xc] sm:$0xf]
        %v1533 = vld [vmem:[%s677 + $0x10] sm:$0xf]
        %v1534 = vld [vmem:[%s677 + $0x14] sm:$0xf]
        %v1535 = vld [vmem:[%s677 + $0x18] sm:$0xf]
        %v1536 = vld [vmem:[%s677 + $0x1c] sm:$0xf]
        %v1537 = vld [vmem:[%s680] sm:$0x1]
        %v1539 = vlaneseq
        %v1540 = vshrl.u32 %v1539, 7
        %v1541 = vsub.s32 0, %v1540
        %v1542 = vrot.slane %v1537, %v1541
        %v1552 = vunpack.c.l.b16 %v1529
        %v1553 = vunpack.c.l.b16 %v1530
        %v1554 = vunpack.c.l.b16 %v1531
        %v1555 = vunpack.c.l.b16 %v1532
        %v1556 = vunpack.c.l.b16 %v1533
        %v1557 = vunpack.c.l.b16 %v1534
        %v1558 = vunpack.c.l.b16 %v1535
        %v1559 = vunpack.c.l.b16 %v1536
        %v1560 = vpack.c.b16 %v1553, %v1552
        %v1561 = vpack.c.b16 %v1555, %v1554
        %v1562 = vpack.c.b16 %v1557, %v1556
        %v1563 = vpack.c.b16 %v1559, %v1558
        %vm1568 = vcmask 523264
        %v1570 = vsel %vm1568, %v1528, 0
        %1572 = vmatprep.subr.bf16.mxu0 0
        %1573 = vmatpush1.bf16.msra.mxu0 0
        %1574 = vmatprep.subr.bf16.mxu0 0
        %1575 = vmatpush1.bf16.msra.mxu0 0
        %1576 = vmatprep.subr.bf16.mxu0 0
        %1577 = vmatpush1.bf16.msra.mxu0 0
        %1578 = vmatprep.subr.bf16.mxu0 0
        %1579 = vmatpush1.bf16.msra.mxu0 0
        %1580 = vmatprep.subr.bf16.mxu0 0
        %1581 = vmatpush1.bf16.msra.mxu0 %v1563
        %1582 = vmatprep.subr.bf16.mxu0 0
        %1583 = vmatpush1.bf16.msra.mxu0 %v1562
        %1584 = vmatprep.subr.bf16.mxu0 0
        %1585 = vmatpush1.bf16.msra.mxu0 %v1561
        %1586 = vmatprep.subr.bf16.mxu0 0
        %1587 = vmatpush1.bf16.msra.mxu0 %v1560
        %1588 = vmatprep.subr.bf16.mxu0 0
        %1589 = vmatpush2.bf16.msra.mxu0 0
        %1590 = vmatprep.subr.bf16.mxu0 0
        %1591 = vmatpush2.bf16.msra.mxu0 0
        %1592 = vmatprep.subr.bf16.mxu0 0
        %1593 = vmatpush2.bf16.msra.mxu0 0
        %1594 = vmatprep.subr.bf16.mxu0 0
        %1595 = vmatpush2.bf16.msra.mxu0 0
        %1596 = vmatprep.subr.bf16.mxu0 0
        %1597 = vmatpush2.bf16.msra.mxu0 0
        %1598 = vmatprep.subr.bf16.mxu0 0
        %1599 = vmatpush2.bf16.msra.mxu0 0
        %1600 = vmatprep.subr.bf16.mxu0 0
        %1601 = vmatpush2.bf16.msra.mxu0 0
        %1602 = vmatprep.subr.bf16.mxu0 0
        %1603 = vmatpush2.bf16.msra.mxu0 0
        %1604 = vmatprep.mubr.bf16.mxu0 0
        %1605 = vmatmul.mubr.bf16.gmra.mxu0 %v1570
        %v1606 = vpop.f32.mrf.mxu0
        %v1607 = vadd.f32 %v1542, %v1606
        %v1608 = vpop.f32.mrf.mxu0
        %v1609 = vpop.f32.mrf.mxu0
        %v1610 = vpop.f32.mrf.mxu0
        %1611 = vdwg.mxu0
        %v1612 = vadd.f32 %v1459, %v1607
        %v1613 = vld [vmem:[%s689] sm:$0x1]
        %v1614 = vld [vmem:[%s692] sm:$0x1]
        %v1615 = vsel %vm719, %v1612, 0.0
        %1616 = vadd.xlane.f32.xlu0 %v1615
        %v1617 = vpop.xlane.xlu0 %1616
        %v1618 = vmul.f32 %v1617, %v1435
        %v1619 = vsub.f32 %v1612, %v1618
        %v1620 = vmul.f32 %v1619, %v1619
        %v1621 = vsel %vm719, %v1620, 0.0
        %1622 = vadd.xlane.f32.xlu0 %v1621
        %v1623 = vpop.xlane.xlu0 %1622
        %v1624 = vmul.f32 %v1623, %v1435
        %v1625 = vadd.f32 %v1624, 1e-05
        %v1626 = vrsqrt.pop %v1625
        %v1627 = vmul.f32 %v1619, %v1626
        %v1629 = vlaneseq
        %v1630 = vshrl.u32 %v1629, 7
        %v1631 = vsub.s32 0, %v1630
        %v1632 = vrot.slane %v1613, %v1631
        %v1634 = vmul.f32 %v1627, %v1632
        %v1636 = vlaneseq
        %v1637 = vshrl.u32 %v1636, 7
        %v1638 = vsub.s32 0, %v1637
        %v1639 = vrot.slane %v1614, %v1638
        %v1641 = vadd.f32 %v1634, %v1639
        %1642 = vst.msk [vmem:[%s654] sm:$0xff] %vm719, %v1641
        %p1643 = scmp.eq.s32.totalorder %s39, 1
        // Predicated region
        $region89: #{tpu_custom_call.1} parent=75 // pred_check
          %p1644 = pneg %p1643
        $region90: #{tpu_custom_call.1} parent=75 // pred_check_branch
          %1646 = sbr.rel (%p1644) target = $region92
        $region91: #{tpu_custom_call.1} parent=75 // pred_region
          %v1647 = vld [vmem:[%s12] sm:$0x1]
          %v1648 = vld [vmem:[%s13] sm:$0x1]
          %v1649 = vsel %vm719, %v1641, 0.0
          %1650 = vadd.xlane.f32.xlu0 %v1649
          %v1651 = vpop.xlane.xlu0 %1650
          %v1652 = vmul.f32 %v1651, %v1435
          %v1653 = vsub.f32 %v1641, %v1652
          %v1654 = vmul.f32 %v1653, %v1653
          %v1655 = vsel %vm719, %v1654, 0.0
          %1656 = vadd.xlane.f32.xlu0 %v1655
          %v1657 = vpop.xlane.xlu0 %1656
          %v1658 = vmul.f32 %v1657, %v1435
          %v1659 = vadd.f32 %v1658, 1e-05
          %v1660 = vrsqrt.pop %v1659
          %v1661 = vmul.f32 %v1653, %v1660
          %v1663 = vlaneseq
          %v1664 = vshrl.u32 %v1663, 7
          %v1665 = vsub.s32 0, %v1664
          %v1666 = vrot.slane %v1647, %v1665
          %v1668 = vmul.f32 %v1661, %v1666
          %v1670 = vlaneseq
          %v1671 = vshrl.u32 %v1670, 7
          %v1672 = vsub.s32 0, %v1671
          %v1673 = vrot.slane %v1648, %v1672
          %v1675 = vadd.f32 %v1668, %v1673
          %1676 = vst.msk [vmem:[%s654] sm:$0xff] %vm719, %v1675
        $region92: #{tpu_custom_call.1} parent=75 // pred_fallthru
          _
        %s1677 = sand.u32 %s408, 1
        %s1678 = scalar_lea.sflag [#allocation4], %s1677
        %s1679 = sand.u32 %s408, 1
        %s1680 = smul.addr %s1679, 8
        %s1681 = scalar_lea.vmem [#allocation7], %s1680
        // Predicated region
        $region93: #{tpu_custom_call.1} parent=75 // pred_check
          %p1682 = pneg %p418
        $region94: #{tpu_custom_call.1} parent=75 // pred_check_branch
          %1684 = sbr.rel (%p1682) target = $region96
        $region95: #{tpu_custom_call.1} parent=75 // pred_region
          %s1686 = ssub.s32 128, 128
          %1687 = vsyncadd %s1678, %s1686
          %s1688 = smul.addr %s38, 128
          %s1689 = scalar_lea.hbm %s14, %s1688
          %s1691 = sshll.u32 %s1681, 4
          %s1692 = int_to_ptr.vmem [resolvable:$true] %s1691
          %1694 = dma.vmem_to_hbm [thread:$0]  %s1692, 128, %s1689, %s1678
        $region96: #{tpu_custom_call.1} parent=75 // pred_fallthru
          _
      $region76: #{tpu_custom_call.1} parent=5 // pred_fallthru
        _
      %p1695 = scmp.le.s32.totalorder 2, %s29
      // Predicated region
      $region97: #{tpu_custom_call.1} parent=5 // pred_check
        %p1696 = pneg %p1695
      $region98: #{tpu_custom_call.1} parent=5 // pred_check_branch
        %1698 = sbr.rel (%p1696) target = $region100
      $region99: #{tpu_custom_call.1} parent=5 // pred_region
        %s1699 = ssub.s32 %s29, 2
        // Predicated region
        $region101: #{tpu_custom_call.1} parent=99 // pred_check
          %p1700 = pneg %p424
        $region102: #{tpu_custom_call.1} parent=99 // pred_check_branch
          %1702 = sbr.rel (%p1700) target = $region104
        $region103: #{tpu_custom_call.1} parent=99 // pred_region
          %s1703 = sand.u32 %s409, 1
          %s1704 = scalar_lea.sflag [#allocation4], %s1703
          %s1705 = sand.u32 %s409, 1
          %s1706 = smul.addr %s1705, 8
          %s1707 = scalar_lea.vmem [#allocation7], %s1706
          %1708 = dma.done %s1704, 128
        $region104: #{tpu_custom_call.1} parent=99 // pred_fallthru
          _
      $region100: #{tpu_custom_call.1} parent=5 // pred_fallthru
        _
    $region6: #{tpu_custom_call.1} parent=1 // loop_footer
      %s33 = sadd.s32 1, %s29
    $region7: #{tpu_custom_call.1} parent=1 // loop_footer_branch
      %28 = sbr.rel target = $region3
    $region8: #{tpu_custom_call.1} parent=1 // loop_exit
      _
    %1709 = vsyncpa [#allocation3], 1
    %s1710 = scalar_lea.sflag [#allocation3], 1
    %1711 = vsyncpa %s1710, 1
    %1712 = vsyncpa [#allocation6], 1
    %s1713 = scalar_lea.sflag [#allocation6], 1
    %1714 = vsyncpa %s1713, 1
    %1715 = vsyncpa [#allocation4], 1
    %s1716 = scalar_lea.sflag [#allocation4], 1
    %1717 = vsyncpa %s1716, 1

</llo_original>
